<compile_context>
chip_gen: v6e
topology: v6e:2x2x1
jax: 0.10.0
libtpu: 0.0.40
codegen_flags: <defaults>
</compile_context>

<pallas_src>
import jax
import jax.numpy as jnp
from jax.experimental import pallas as pl
from jax.experimental.pallas import tpu as pltpu

EPS = 1e-6


# ---------------------------------------------------------------------------
# Hardware probes (best effort, safe fallbacks)
# ---------------------------------------------------------------------------
def _device_kind():
    try:
        return jax.devices()[0].device_kind.lower()
    except Exception:
        return ""


def _vmem_capacity_bytes():
    kind = _device_kind()
    if "v7" in kind:
        return 64 * 1024 * 1024
    if any(t in kind for t in ("v4", "v5", "v6")):
        return 128 * 1024 * 1024
    try:
        cap = getattr(pltpu.get_tpu_info(), "vmem_capacity_bytes", None)
        if cap:
            return int(cap)
    except Exception:
        pass
    return 64 * 1024 * 1024            # conservative default (v7x per-TC VMEM)


def _num_tensorcores():
    kind = _device_kind()
    if any(t in kind for t in ("v7", "v4", "v5p")):
        return 2
    return 1


def _supports_bf16_valu():
    kind = _device_kind()
    return ("v6" in kind) or ("v7" in kind)


_VMEM_CAP = _vmem_capacity_bytes()
_VMEM_BUDGET = int(_VMEM_CAP * 0.45)   # data-buffer budget used for tile planning
_VMEM_LIMIT = int(_VMEM_CAP * 0.75)    # scoped VMEM limit handed to Mosaic


# ---------------------------------------------------------------------------
# Tiling helpers
# ---------------------------------------------------------------------------
def _round_up(v, m):
    return -(-v // m) * m


def _sublane_pack(itemsize):
    return max(8, 32 // max(1, itemsize))     # 8 for f32, 16 for bf16


def _divisors(n):
    return [d for d in range(1, n + 1) if n % d == 0]


def _largest_divisor_leq(n, cap):
    cap = max(1, min(n, int(cap)))
    for d in range(cap, 0, -1):
        if n % d == 0:
            return d
    return 1


def _block_bytes(tr, sub_e, lane_e, itemsize, lead=1, n_f32_temps=3):
    """Conservative per-grid-step VMEM footprint: in+out double-buffered in the
    native dtype plus live f32 temporaries, with (sublane, lane) tile padding."""
    pad_elems = (tr * lead * _round_up(sub_e, _sublane_pack(itemsize))
                 * _round_up(lane_e, 128))
    return pad_elems * (4 * itemsize + 4 * n_f32_temps)


def _min_grid_steps(rows):
    return min(rows, max(2, 2 * _num_tensorcores()))


def _pick_row_tile(rows, sub_e, lane_e, itemsize, lead=1):
    """Largest divisor of `rows` that fits the VMEM budget and keeps at least
    2*num_tensorcores grid steps (so v7x's two TCs both get work)."""
    tr = _largest_divisor_leq(rows, rows // _min_grid_steps(rows))
    while tr > 1 and _block_bytes(tr, sub_e, lane_e, itemsize, lead) > _VMEM_BUDGET:
        tr = _largest_divisor_leq(rows, tr - 1)
    return tr


def _choose_fold(cg, hw, itemsize):
    """Pick Hs so the (Cg*Hs, HW/Hs) view minimises vreg padding, preferring a
    lane extent that is a multiple of 128 (unmasked stores), then wider lanes."""
    sub = _sublane_pack(itemsize)
    best_key, best_hs = None, 1
    for hs in _divisors(hw):
        sub_e, lane_e = cg * hs, hw // hs
        pad = _round_up(sub_e, sub) * _round_up(lane_e, 128)
        key = (pad, 0 if lane_e % 128 == 0 else 1, -lane_e)
        if best_key is None or key < best_key:
            best_key, best_hs = key, hs
    return best_hs


def _choose_lane_chunk(lane, sub_e, itemsize, budget):
    """Largest divisor of `lane` whose single-row block fits `budget`,
    preferring multiples of 128."""
    best_key, best_lc = None, lane
    for lc in _divisors(lane):
        fits = _block_bytes(1, sub_e, lc, itemsize) <= budget
        key = (0 if fits else 1, 0 if lc % 128 == 0 else 1, -lc if fits else lc)
        if best_key is None or key < best_key:
            best_key, best_lc = key, lc
    return best_lc


def _apply_dtype_for(x_dtype):
    if x_dtype == jnp.bfloat16 and _supports_bf16_valu():
        return jnp.bfloat16
    return jnp.float32


# ---------------------------------------------------------------------------
# Kernels
# ---------------------------------------------------------------------------
def _make_fused_kernel(apply_dtype):
    """Single-pass GroupNorm over a (TR, SUB, LANE) row view."""
    def kernel(x_ref, g_ref, b_ref, o_ref):
        xf = x_ref[...].astype(jnp.float32)                        # (TR, SUB, LANE)
        inv_n = 1.0 / float(xf.shape[1] * xf.shape[2])
        # One-pass stats: lane reduce (XLU) then sublane reduce.
        s1 = jnp.sum(jnp.sum(xf, axis=2, keepdims=True), axis=1, keepdims=True)
        sq = xf * xf
        s2 = jnp.sum(jnp.sum(sq, axis=2, keepdims=True), axis=1, keepdims=True)
        mean = s1 * inv_n                                          # (TR, 1, 1)
        var = jnp.maximum(s2 * inv_n - mean * mean, 0.0)
        inv = jax.lax.rsqrt(var + EPS)
        a = inv * g_ref[...].astype(jnp.float32)                   # (TR, SUB, 1)
        c = b_ref[...].astype(jnp.float32) - mean * a
        if apply_dtype == jnp.float32:
            o_ref[...] = (xf * a + c).astype(o_ref.dtype)
        else:
            # bf16 FMA (v6e/v7x): packed vregs, no full-tile f32 casts in the apply.
            o_ref[...] = (x_ref[...] * a.astype(apply_dtype)
                          + c.astype(apply_dtype)).astype(o_ref.dtype)
    return kernel


def _stats_kernel(x_ref, s1_ref, s2_ref):
    """Pass 1 of the spatially-tiled path: accumulate per-row sum / sum-sq."""
    @pl.when(pl.program_id(1) == 0)
    def _():
        s1_ref[...] = jnp.zeros_like(s1_ref)
        s2_ref[...] = jnp.zeros_like(s2_ref)
    xf = x_ref[...].astype(jnp.float32)                            # (TR, SUB, LANEc)
    s1_ref[...] += jnp.sum(jnp.sum(xf, axis=2, keepdims=True), axis=1, keepdims=True)
    sq = xf * xf
    s2_ref[...] += jnp.sum(jnp.sum(sq, axis=2, keepdims=True), axis=1, keepdims=True)


def _make_apply_kernel(apply_dtype):
    """Pass 2 of the spatially-tiled path: out = x * a + c."""
    def kernel(x_ref, a_ref, c_ref, o_ref):
        if apply_dtype == jnp.float32:
            o_ref[...] = (x_ref[...].astype(jnp.float32) * a_ref[...]
                          + c_ref[...]).astype(o_ref.dtype)
        else:
            o_ref[...] = (x_ref[...] * a_ref[...] + c_ref[...]).astype(o_ref.dtype)
    return kernel


def _make_fused_5d_kernel(apply_dtype):
    """GroupNorm on a (TR, Cg, T, HW) row view with per-(row, t) statistics —
    matches applying nn.GroupNorm frame-by-frame, without wrapper transposes."""
    def kernel(x_ref, g_ref, b_ref, o_ref):
        xf = x_ref[...].astype(jnp.float32)                        # (TR, Cg, T, HW)
        inv_n = 1.0 / float(xf.shape[1] * xf.shape[3])
        s1 = jnp.sum(jnp.sum(xf, axis=3, keepdims=True), axis=1, keepdims=True)
        sq = xf * xf
        s2 = jnp.sum(jnp.sum(sq, axis=3, keepdims=True), axis=1, keepdims=True)
        mean = s1 * inv_n                                          # (TR, 1, T, 1)
        var = jnp.maximum(s2 * inv_n - mean * mean, 0.0)
        inv = jax.lax.rsqrt(var + EPS)
        a = inv * g_ref[...].astype(jnp.float32)                   # (TR, Cg, T, 1)
        c = b_ref[...].astype(jnp.float32) - mean * a
        if apply_dtype == jnp.float32:
            o_ref[...] = (xf * a + c).astype(o_ref.dtype)
        else:
            o_ref[...] = (x_ref[...] * a.astype(apply_dtype)
                          + c.astype(apply_dtype)).astype(o_ref.dtype)
    return kernel


# ---------------------------------------------------------------------------
# Wrappers
# ---------------------------------------------------------------------------
def _group_norm_tiled(x3, gamma_rows, beta_rows, itemsize, apply_dtype,
                      force_chunks=None):
    """Two-pass GroupNorm for rows too large for one VMEM block: stats kernel
    (sum/sum-sq accumulated over lane chunks) + apply kernel (out = x*a + c)."""
    ROWS, SUB_E, LANE = x3.shape
    if force_chunks is not None:
        assert LANE % force_chunks == 0
        LANEc = LANE // force_chunks
    else:
        LANEc = _choose_lane_chunk(LANE, SUB_E, itemsize, _VMEM_BUDGET)
    n_chunks = LANE // LANEc
    TR = _pick_row_tile(ROWS, SUB_E, LANEc, itemsize)

    s1, s2 = pl.pallas_call(
        _stats_kernel,
        out_shape=(jax.ShapeDtypeStruct((ROWS, 1, 1), jnp.float32),
                   jax.ShapeDtypeStruct((ROWS, 1, 1), jnp.float32)),
        grid_spec=pltpu.PrefetchScalarGridSpec(
            num_scalar_prefetch=0,
            grid=(ROWS // TR, n_chunks),
            in_specs=[pl.BlockSpec((TR, SUB_E, LANEc), lambda i, j: (i, 0, j))],
            out_specs=[pl.BlockSpec((TR, 1, 1), lambda i, j: (i, 0, 0)),
                       pl.BlockSpec((TR, 1, 1), lambda i, j: (i, 0, 0))],
        ),
        compiler_params=pltpu.CompilerParams(
            dimension_semantics=("parallel", "arbitrary"),
            vmem_limit_bytes=_VMEM_LIMIT,
        ),
    )(x3)

    # Tiny (ROWS, SUB_E, 1) affine fold between the two passes (plain XLA ops).
    inv_n = 1.0 / float(SUB_E * LANE)
    mean = s1 * inv_n
    var = jnp.maximum(s2 * inv_n - mean * mean, 0.0)
    inv = jax.lax.rsqrt(var + EPS)
    gf = gamma_rows.astype(jnp.float32)
    a = (inv * gf).astype(apply_dtype)
    c = (beta_rows.astype(jnp.float32) - mean * inv * gf).astype(apply_dtype)

    return pl.pallas_call(
        _make_apply_kernel(apply_dtype),
        out_shape=jax.ShapeDtypeStruct(x3.shape, x3.dtype),
        grid_spec=pltpu.PrefetchScalarGridSpec(
            num_scalar_prefetch=0,
            grid=(ROWS // TR, n_chunks),
            in_specs=[pl.BlockSpec((TR, SUB_E, LANEc), lambda i, j: (i, 0, j)),
                      pl.BlockSpec((TR, SUB_E, 1), lambda i, j: (i, 0, 0)),
                      pl.BlockSpec((TR, SUB_E, 1), lambda i, j: (i, 0, 0))],
            out_specs=pl.BlockSpec((TR, SUB_E, LANEc), lambda i, j: (i, 0, j)),
        ),
        compiler_params=pltpu.CompilerParams(
            dimension_semantics=("parallel", "arbitrary"),
            vmem_limit_bytes=_VMEM_LIMIT,
        ),
    )(x3, a, c)


def group_norm_nchw(x, gamma, beta, num_groups, *, _force_tiled=False,
                    _force_chunks=None):
    """GroupNorm(num_groups, eps=1e-6, affine=True) on NCHW input via Pallas."""
    B, C, H, W = x.shape
    G = num_groups
    assert C % G == 0, "channels must be divisible by num_groups"
    Cg, HW, ROWS = C // G, H * W, B * G
    itemsize = jnp.dtype(x.dtype).itemsize
    apply_dtype = _apply_dtype_for(x.dtype)

    # Sublane/lane densification: pure-view fold of HW into the sublane axis.
    Hs = _choose_fold(Cg, HW, itemsize)
    SUB_E, LANE = Cg * Hs, HW // Hs
    x3 = x.reshape(ROWS, SUB_E, LANE)

    # Tiny row-tiled affine params (ROWS, Cg*Hs, 1); decouples TR from G.
    g2 = jnp.repeat(gamma.reshape(G, Cg), Hs, axis=1).reshape(G, SUB_E, 1)
    b2 = jnp.repeat(beta.reshape(G, Cg), Hs, axis=1).reshape(G, SUB_E, 1)
    gamma_rows = jnp.tile(g2, (B, 1, 1))
    beta_rows = jnp.tile(b2, (B, 1, 1))

    fits_fused = _block_bytes(1, SUB_E, LANE, itemsize) <= _VMEM_BUDGET
    if fits_fused and not _force_tiled:
        TR = _pick_row_tile(ROWS, SUB_E, LANE, itemsize)
        out = pl.pallas_call(
            _make_fused_kernel(apply_dtype),
            out_shape=jax.ShapeDtypeStruct((ROWS, SUB_E, LANE), x.dtype),
            grid_spec=pltpu.PrefetchScalarGridSpec(
                num_scalar_prefetch=0,
                grid=(ROWS // TR,),
                in_specs=[
                    pl.BlockSpec((TR, SUB_E, LANE), lambda i: (i, 0, 0)),
                    pl.BlockSpec((TR, SUB_E, 1), lambda i: (i, 0, 0)),
                    pl.BlockSpec((TR, SUB_E, 1), lambda i: (i, 0, 0)),
                ],
                out_specs=pl.BlockSpec((TR, SUB_E, LANE), lambda i: (i, 0, 0)),
            ),
            compiler_params=pltpu.CompilerParams(
                dimension_semantics=("parallel",),
                vmem_limit_bytes=_VMEM_LIMIT,
            ),
        )(x3, gamma_rows, beta_rows)
    else:
        out = _group_norm_tiled(x3, gamma_rows, beta_rows, itemsize, apply_dtype,
                                force_chunks=_force_chunks)
    return out.reshape(B, C, H, W)


def group_norm_ncthw(x, gamma, beta, num_groups):
    """Per-frame GroupNorm on (B, C, T, H, W), equivalent to
    rearrange('B C T H W -> (B T) C H W') -> GroupNorm -> back, but computed on
    a pure-view (B*G, Cg, T, HW) layout with per-(row, t) stats (no transposes)."""
    B, C, T, H, W = x.shape
    G = num_groups
    assert C % G == 0, "channels must be divisible by num_groups"
    Cg, HW, ROWS = C // G, H * W, B * G
    itemsize = jnp.dtype(x.dtype).itemsize
    apply_dtype = _apply_dtype_for(x.dtype)

    if _block_bytes(1, T, HW, itemsize, lead=Cg) > _VMEM_BUDGET:
        # TODO(synk): spatially-tiled per-frame stats for very large T*H*W rows;
        # fall back to the (transpose -> 4-D -> transpose) path for now.
        xr = jnp.transpose(x, (0, 2, 1, 3, 4)).reshape(B * T, C, H, W)
        y = group_norm_nchw(xr, gamma, beta, G)
        return jnp.transpose(y.reshape(B, T, C, H, W), (0, 2, 1, 3, 4))

    x4 = x.reshape(ROWS, Cg, T, HW)
    gamma_rows = jnp.tile(gamma.reshape(G, Cg, 1, 1), (B, 1, 1, 1))
    beta_rows = jnp.tile(beta.reshape(G, Cg, 1, 1), (B, 1, 1, 1))
    TR = _pick_row_tile(ROWS, T, HW, itemsize, lead=Cg)

    out = pl.pallas_call(
        _make_fused_5d_kernel(apply_dtype),
        out_shape=jax.ShapeDtypeStruct((ROWS, Cg, T, HW), x.dtype),
        grid_spec=pltpu.PrefetchScalarGridSpec(
            num_scalar_prefetch=0,
            grid=(ROWS // TR,),
            in_specs=[
                pl.BlockSpec((TR, Cg, T, HW), lambda i: (i, 0, 0, 0)),
                pl.BlockSpec((TR, Cg, 1, 1), lambda i: (i, 0, 0, 0)),
                pl.BlockSpec((TR, Cg, 1, 1), lambda i: (i, 0, 0, 0)),
            ],
            out_specs=pl.BlockSpec((TR, Cg, T, HW), lambda i: (i, 0, 0, 0)),
        ),
        compiler_params=pltpu.CompilerParams(
            dimension_semantics=("parallel",),
            vmem_limit_bytes=_VMEM_LIMIT,
        ),
    )(x4, gamma_rows, beta_rows)
    return out.reshape(B, C, T, H, W)


def normalize_forward(x, gamma, beta, norm_type="group", norm_axis="spatial"):
    """Forward pass of Infinity's Normalize module."""
    if norm_type == "no":
        return x
    # TODO(synk): norm_type='batch' (SyncBatchNorm, track_running_stats=False)
    # requires cross-device batch statistics; not implemented here.
    assert norm_type == "group"
    assert norm_axis == "spatial"
    C = x.shape[1]
    if C % 32 == 0:
        G = 32
    elif C % 24 == 0:
        G = 24
    else:
        raise NotImplementedError
    if x.ndim == 4:
        return group_norm_nchw(x, gamma, beta, G)
    return group_norm_ncthw(x, gamma, beta, G)


# ---------------------------------------------------------------------------
# Pure-JAX references
# ---------------------------------------------------------------------------
def _ref_groupnorm_4d(x, gamma, beta, G):
    B, C, H, W = x.shape
    xr = x.astype(jnp.float32).reshape(B, G, -1)
    mean = xr.mean(-1, keepdims=True)
    var = ((xr - mean) ** 2).mean(-1, keepdims=True)
    xn = ((xr - mean) / jnp.sqrt(var + EPS)).reshape(B, C, H, W)
    return xn * gamma.reshape(1, C, 1, 1) + beta.reshape(1, C, 1, 1)


def _ref_groupnorm_5d(x, gamma, beta, G):
    B, C, T, H, W = x.shape
    xr = jnp.transpose(x, (0, 2, 1, 3, 4)).reshape(B * T, C, H, W)
    y = _ref_groupnorm_4d(xr, gamma, beta, G)
    return jnp.transpose(y.reshape(B, T, C, H, W), (0, 2, 1, 3, 4))


if __name__ == "__main__":
    key = jax.random.PRNGKey(0)
    kx, kg, kb, kx2, kx3 = jax.random.split(key, 5)

    # ---- 1) f32 4-D, fused single-pass path --------------------------------
    B, C, H, W = 2, 64, 16, 16           # C % 32 == 0 -> 32 groups, Cg = 2
    G = 32
    x = jax.random.normal(kx, (B, C, H, W), dtype=jnp.float32)
    gamma = jnp.ones((C,), jnp.float32) + 0.1 * jax.random.normal(kg, (C,), jnp.float32)
    beta = 0.1 * jax.random.normal(kb, (C,), jnp.float32)

    out = jax.block_until_ready(normalize_forward(x, gamma, beta))
    ref = _ref_groupnorm_4d(x, gamma, beta, G)
    err = float(jnp.max(jnp.abs(out.astype(jnp.float32) - ref)))
    assert out.shape == x.shape and err < 3e-4, f"fused f32 mismatch: {err}"

    # ---- 2) bf16 4-D (bf16 apply on chips with a bf16 VALU) -----------------
    xb = x.astype(jnp.bfloat16)
    outb = jax.block_until_ready(normalize_forward(xb, gamma, beta))
    refb = _ref_groupnorm_4d(xb, gamma, beta, G)
    errb = float(jnp.max(jnp.abs(outb.astype(jnp.float32) - refb)))
    assert outb.dtype == jnp.bfloat16 and errb < 0.15, f"bf16 mismatch: {errb}"

    # ---- 3) spatially-tiled two-pass path (forced) --------------------------
    x2 = jax.random.normal(kx2, (2, 64, 32, 32), dtype=jnp.float32)
    out2 = jax.block_until_ready(
        group_norm_nchw(x2, gamma, beta, G, _force_tiled=True, _force_chunks=2))
    ref2 = _ref_groupnorm_4d(x2, gamma, beta, G)
    err2 = float(jnp.max(jnp.abs(out2 - ref2)))
    assert err2 < 3e-4, f"tiled-path mismatch: {err2}"

    # ---- 4) 5-D (B, C, T, H, W) path, no wrapper transposes -----------------
    x3 = jax.random.normal(kx3, (1, 64, 4, 8, 8), dtype=jnp.float32)
    out3 = jax.block_until_ready(normalize_forward(x3, gamma, beta))
    ref3 = _ref_groupnorm_5d(x3, gamma, beta, G)
    err3 = float(jnp.max(jnp.abs(out3 - ref3)))
    assert out3.shape == x3.shape and err3 < 3e-4, f"5-D path mismatch: {err3}"

    print("KERNEL_OK")
</pallas_src>

<mosaic_0001>
module attributes {stable_mosaic.version = 11 : i64} {
  func.func @kernel(%arg0: i32, %arg1: memref<32x4x128xf32, #tpu.memory_space<vmem>>, %arg2: memref<32x4x1xf32, #tpu.memory_space<vmem>>, %arg3: memref<32x4x1xf32, #tpu.memory_space<vmem>>, %arg4: memref<32x4x128xf32, #tpu.memory_space<vmem>>) attributes {dimension_semantics = [#tpu.dimension_semantics<parallel>], iteration_bounds = array<i64: 2>, scalar_prefetch = 0 : i64, scratch_operands = 0 : i64, tpu.core_type = #tpu.core_type<tc>, window_params = [{transform_indices = @transform_0, window_bounds = array<i64: 32, 4, 128>}, {transform_indices = @transform_1, window_bounds = array<i64: 32, 4, 1>}, {transform_indices = @transform_2, window_bounds = array<i64: 32, 4, 1>}, {transform_indices = @transform_3, window_bounds = array<i64: 32, 4, 128>}]} {
    %c0 = arith.constant 0 : index
    %c0_0 = arith.constant 0 : index
    %c0_1 = arith.constant 0 : index
    %0 = vector.load %arg1[%c0, %c0_0, %c0_1] : memref<32x4x128xf32, #tpu.memory_space<vmem>>, vector<32x4x128xf32>
    %cst = arith.constant dense<0.000000e+00> : vector<32x4xf32>
    %1 = vector.multi_reduction <add>, %0, %cst [2] : vector<32x4x128xf32> to vector<32x4xf32>
    %2 = vector.shape_cast %1 : vector<32x4xf32> to vector<32x4x1xf32>
    %cst_2 = arith.constant dense<0.000000e+00> : vector<32x1xf32>
    %3 = vector.multi_reduction <add>, %2, %cst_2 [1] : vector<32x4x1xf32> to vector<32x1xf32>
    %4 = vector.shape_cast %3 : vector<32x1xf32> to vector<32x1x1xf32>
    %5 = arith.mulf %0, %0 : vector<32x4x128xf32>
    %cst_3 = arith.constant dense<0.000000e+00> : vector<32x4xf32>
    %6 = vector.multi_reduction <add>, %5, %cst_3 [2] : vector<32x4x128xf32> to vector<32x4xf32>
    %7 = vector.shape_cast %6 : vector<32x4xf32> to vector<32x4x1xf32>
    %cst_4 = arith.constant dense<0.000000e+00> : vector<32x1xf32>
    %8 = vector.multi_reduction <add>, %7, %cst_4 [1] : vector<32x4x1xf32> to vector<32x1xf32>
    %9 = vector.shape_cast %8 : vector<32x1xf32> to vector<32x1x1xf32>
    %cst_5 = arith.constant 0.001953125 : f32
    %10 = vector.broadcast %cst_5 : f32 to vector<32x1x1xf32>
    %11 = arith.mulf %4, %10 : vector<32x1x1xf32>
    %cst_6 = arith.constant 0.001953125 : f32
    %12 = vector.broadcast %cst_6 : f32 to vector<32x1x1xf32>
    %13 = arith.mulf %9, %12 : vector<32x1x1xf32>
    %14 = arith.mulf %11, %11 : vector<32x1x1xf32>
    %15 = arith.subf %13, %14 : vector<32x1x1xf32>
    %cst_7 = arith.constant 0.000000e+00 : f32
    %16 = vector.broadcast %cst_7 : f32 to vector<32x1x1xf32>
    %17 = arith.maximumf %15, %16 : vector<32x1x1xf32>
    %cst_8 = arith.constant 9.99999997E-7 : f32
    %18 = vector.broadcast %cst_8 : f32 to vector<32x1x1xf32>
    %19 = arith.addf %17, %18 : vector<32x1x1xf32>
    %20 = math.rsqrt %19 : vector<32x1x1xf32>
    %c0_9 = arith.constant 0 : index
    %c0_10 = arith.constant 0 : index
    %c0_11 = arith.constant 0 : index
    %21 = vector.load %arg2[%c0_9, %c0_10, %c0_11] : memref<32x4x1xf32, #tpu.memory_space<vmem>>, vector<32x4x1xf32>
    %22 = vector.broadcast %20 : vector<32x1x1xf32> to vector<32x4x1xf32>
    %23 = arith.mulf %22, %21 : vector<32x4x1xf32>
    %c0_12 = arith.constant 0 : index
    %c0_13 = arith.constant 0 : index
    %c0_14 = arith.constant 0 : index
    %24 = vector.load %arg3[%c0_12, %c0_13, %c0_14] : memref<32x4x1xf32, #tpu.memory_space<vmem>>, vector<32x4x1xf32>
    %25 = vector.broadcast %11 : vector<32x1x1xf32> to vector<32x4x1xf32>
    %26 = arith.mulf %25, %23 : vector<32x4x1xf32>
    %27 = arith.subf %24, %26 : vector<32x4x1xf32>
    %28 = vector.broadcast %23 : vector<32x4x1xf32> to vector<32x4x128xf32>
    %29 = arith.mulf %0, %28 : vector<32x4x128xf32>
    %30 = vector.broadcast %27 : vector<32x4x1xf32> to vector<32x4x128xf32>
    %31 = arith.addf %29, %30 : vector<32x4x128xf32>
    %c0_15 = arith.constant 0 : index
    %c0_16 = arith.constant 0 : index
    %c0_17 = arith.constant 0 : index
    %32 = vector.load %arg4[%c0_15, %c0_16, %c0_17] : memref<32x4x128xf32, #tpu.memory_space<vmem>>, vector<32x4x128xf32>
    tpu.vector_store %arg4[%c0_15, %c0_16, %c0_17], %31 {strides = array<i32>} : memref<32x4x128xf32, #tpu.memory_space<vmem>>, vector<32x4x128xf32>,
    return
  }
  func.func @transform_0(%arg0: i32) -> (i32, i32, i32) {
    %c0_i32 = arith.constant 0 : i32
    %c0_i32_0 = arith.constant 0 : i32
    %c0_i32_1 = arith.constant 0 : i32
    return %arg0, %c0_i32, %c0_i32_0 : i32, i32, i32
  }
  func.func @transform_1(%arg0: i32) -> (i32, i32, i32) {
    %c0_i32 = arith.constant 0 : i32
    %c0_i32_0 = arith.constant 0 : i32
    %c0_i32_1 = arith.constant 0 : i32
    return %arg0, %c0_i32, %c0_i32_0 : i32, i32, i32
  }
  func.func @transform_2(%arg0: i32) -> (i32, i32, i32) {
    %c0_i32 = arith.constant 0 : i32
    %c0_i32_0 = arith.constant 0 : i32
    %c0_i32_1 = arith.constant 0 : i32
    return %arg0, %c0_i32, %c0_i32_0 : i32, i32, i32
  }
  func.func @transform_3(%arg0: i32) -> (i32, i32, i32) {
    %c0_i32 = arith.constant 0 : i32
    %c0_i32_0 = arith.constant 0 : i32
    %c0_i32_1 = arith.constant 0 : i32
    return %arg0, %c0_i32, %c0_i32_0 : i32, i32, i32
  }
}

</mosaic_0001>

<llo_original>
// kernel: tpu_custom_call.1
$region0: #{tpu_custom_call.1}
  #allocation0 [shape = 'u32[]', space=smem, size = 0x4, offset = 0x4, fixed_abs, tag = 'smem constant byte address 0x4 - core index']
  #allocation1 [shape = 'u32[144,128]{1,0:T(1,128)}', space=vmem, size = 0x12000, scoped, tag = 'internal scratch']
  %s0 = inlined_call_operand.vmem [shape: f32[64,4,128], index: 0, kind: input, shape index: {}]
  %s1 = inlined_call_operand.vmem [shape: f32[64,4,1], index: 1, kind: input, shape index: {}]
  %s2 = inlined_call_operand.vmem [shape: f32[64,4,1], index: 2, kind: input, shape index: {}]
  %s3 = inlined_call_operand.hbm [shape: f32[64,4,128], index: 3, kind: output, shape index: {}]
  %s4 = sld [smem:[#allocation0]]
  $region45: #{tpu_custom_call.1} parent=0
    _
  %s6 = ssub.s32 1, %s4
  %s7 = scalar_select 0, %s6, %s4
  $region1: #{tpu_custom_call.1} parent=0
    #allocation2 [shape = 'u8[131072]{0}', space=vmem, size = 0x20000, scoped, tag = 'output window, operand 0']
    #allocation3 [shape = 's32[2]{0}', space=sflag, size = 0x8, scoped, tag = 'scoped memory for tpu_custom_call.1']
    %8 = vsyncpa [#allocation3], 0
    %s9 = scalar_lea.sflag [#allocation3], 1
    %10 = vsyncpa %s9, 0
    loop: start=0, step=1, limit=4
    $region2: #{tpu_custom_call.1} parent=1 // loop_pre_header
      _
    $region3: #{tpu_custom_call.1} parent=1 // loop_header
      %s12 = sphi 0, %s16
      %p13 = scmp.ge.s32.totalorder %s12, 4
      %s22 = sphi 0, %s24
      %s25 = sphi 0, %s22
      %s26 = sphi 0, %s25
      %s42 = sphi 0, %s26
      %s48 = sphi 0, %s50
      %s51 = sphi 0, %s48
      %s52 = sphi 0, %s51
      %s68 = sphi 0, %s52
      %s74 = sphi 0, %s76
      %s77 = sphi 0, %s74
      %s78 = sphi 0, %s77
      %s94 = sphi 0, %s78
      %s100 = sphi 0, %s102
      %s103 = sphi 0, %s100
      %s104 = sphi 0, %s103
      %s120 = sphi 0, %s104
    $region4: #{tpu_custom_call.1} parent=1 // loop_header_branch
      %15 = sbr.rel (%p13) target = $region8
    $region5: #{tpu_custom_call.1} parent=1 // loop_body
      %s17 = ssub.s32 %s12, 1
      %s18 = ssub.s32 %s12, 2
      %s19 = sadd.s32 %s12, 1
      %s20 = ssub.s32 %s12, %s19
      %p21 = scmp.eq.s32.totalorder %s20, 0
      %s23 = sadd.s32 %s22, 1
      %s24 = scalar_select %p21, %s22, %s23
      %p27 = pneg %p21
      %p28 = scmp.eq.s32.totalorder %s12, 1
      %p29 = por %p27, %p28
      %p30 = scmp.ne.s32.totalorder %s22, %s25
      %p31 = scmp.eq.s32.totalorder %s12, 0
      %p32 = por %p30, %p31
      %p33 = scmp.ne.s32.totalorder %s22, %s25
      %p34 = scmp.eq.s32.totalorder %s17, 1
      %p35 = por %p33, %p34
      %p36 = scmp.ne.s32.totalorder %s25, %s26
      %p37 = scmp.eq.s32.totalorder %s17, 0
      %p38 = por %p36, %p37
      %p39 = scmp.ne.s32.totalorder %s25, %s26
      %p40 = scmp.eq.s32.totalorder %s18, 1
      %p41 = por %p39, %p40
      %p43 = scmp.ne.s32.totalorder %s26, %s42
      %p44 = scmp.eq.s32.totalorder %s18, 0
      %p45 = por %p43, %p44
      %s46 = ssub.s32 %s12, %s19
      %p47 = scmp.eq.s32.totalorder %s46, 0
      %s49 = sadd.s32 %s48, 1
      %s50 = scalar_select %p47, %s48, %s49
      %p53 = pneg %p47
      %p54 = scmp.eq.s32.totalorder %s12, 1
      %p55 = por %p53, %p54
      %p56 = scmp.ne.s32.totalorder %s48, %s51
      %p57 = scmp.eq.s32.totalorder %s12, 0
      %p58 = por %p56, %p57
      %p59 = scmp.ne.s32.totalorder %s48, %s51
      %p60 = scmp.eq.s32.totalorder %s17, 1
      %p61 = por %p59, %p60
      %p62 = scmp.ne.s32.totalorder %s51, %s52
      %p63 = scmp.eq.s32.totalorder %s17, 0
      %p64 = por %p62, %p63
      %p65 = scmp.ne.s32.totalorder %s51, %s52
      %p66 = scmp.eq.s32.totalorder %s18, 1
      %p67 = por %p65, %p66
      %p69 = scmp.ne.s32.totalorder %s52, %s68
      %p70 = scmp.eq.s32.totalorder %s18, 0
      %p71 = por %p69, %p70
      %s72 = ssub.s32 %s12, %s19
      %p73 = scmp.eq.s32.totalorder %s72, 0
      %s75 = sadd.s32 %s74, 1
      %s76 = scalar_select %p73, %s74, %s75
      %p79 = pneg %p73
      %p80 = scmp.eq.s32.totalorder %s12, 1
      %p81 = por %p79, %p80
      %p82 = scmp.ne.s32.totalorder %s74, %s77
      %p83 = scmp.eq.s32.totalorder %s12, 0
      %p84 = por %p82, %p83
      %p85 = scmp.ne.s32.totalorder %s74, %s77
      %p86 = scmp.eq.s32.totalorder %s17, 1
      %p87 = por %p85, %p86
      %p88 = scmp.ne.s32.totalorder %s77, %s78
      %p89 = scmp.eq.s32.totalorder %s17, 0
      %p90 = por %p88, %p89
      %p91 = scmp.ne.s32.totalorder %s77, %s78
      %p92 = scmp.eq.s32.totalorder %s18, 1
      %p93 = por %p91, %p92
      %p95 = scmp.ne.s32.totalorder %s78, %s94
      %p96 = scmp.eq.s32.totalorder %s18, 0
      %p97 = por %p95, %p96
      %s98 = ssub.s32 %s12, %s19
      %p99 = scmp.eq.s32.totalorder %s98, 0
      %s101 = sadd.s32 %s100, 1
      %s102 = scalar_select %p99, %s100, %s101
      %p105 = pneg %p99
      %p106 = scmp.eq.s32.totalorder %s12, 1
      %p107 = por %p105, %p106
      %p108 = scmp.ne.s32.totalorder %s100, %s103
      %p109 = scmp.eq.s32.totalorder %s12, 0
      %p110 = por %p108, %p109
      %p111 = scmp.ne.s32.totalorder %s100, %s103
      %p112 = scmp.eq.s32.totalorder %s17, 1
      %p113 = por %p111, %p112
      %p114 = scmp.ne.s32.totalorder %s103, %s104
      %p115 = scmp.eq.s32.totalorder %s17, 0
      %p116 = por %p114, %p115
      %p117 = scmp.ne.s32.totalorder %s103, %s104
      %p118 = scmp.eq.s32.totalorder %s18, 1
      %p119 = por %p117, %p118
      %p121 = scmp.ne.s32.totalorder %s104, %s120
      %p122 = scmp.eq.s32.totalorder %s18, 0
      %p123 = por %p121, %p122
      %p124 = scmp.le.s32.totalorder 1, %s12
      %p125 = scmp.lt.s32.totalorder %s12, 3
      %p126 = pnand %p124, %p125
      %p127 = pneg %p126
      // Predicated region
      $region9: #{tpu_custom_call.1} parent=5 // pred_check
        _
      $region10: #{tpu_custom_call.1} parent=5 // pred_check_branch
        %129 = sbr.rel (%p126) target = $region12
      $region11: #{tpu_custom_call.1} parent=5 // pred_region
        %s130 = ssub.s32 %s12, 1
      $region12: #{tpu_custom_call.1} parent=5 // pred_fallthru
        _
      %p131 = scmp.lt.s32.totalorder %s12, 2
      // Predicated region
      $region13: #{tpu_custom_call.1} parent=5 // pred_check
        %p132 = pneg %p131
      $region14: #{tpu_custom_call.1} parent=5 // pred_check_branch
        %134 = sbr.rel (%p132) target = $region16
      $region15: #{tpu_custom_call.1} parent=5 // pred_region
        // Predicated region
        $region17: #{tpu_custom_call.1} parent=15 // pred_check
          %p135 = pneg %p32
        $region18: #{tpu_custom_call.1} parent=15 // pred_check_branch
          %137 = sbr.rel (%p135) target = $region20
        $region19: #{tpu_custom_call.1} parent=15 // pred_region
          %s138 = smul.u32 32, %s12
          %p139 = scmp.lt.s32.totalorder %s138, 63
          %s140 = scalar_select %p139, %s138, 63
          %s141 = smul.addr %s140, 4
          %s142 = scalar_lea.vmem %s0, %s141
          %s143 = smul.u32 32, %s12
        $region20: #{tpu_custom_call.1} parent=15 // pred_fallthru
          _
        // Predicated region
        $region21: #{tpu_custom_call.1} parent=15 // pred_check
          %p144 = pneg %p58
        $region22: #{tpu_custom_call.1} parent=15 // pred_check_branch
          %146 = sbr.rel (%p144) target = $region24
        $region23: #{tpu_custom_call.1} parent=15 // pred_region
          %s147 = smul.u32 32, %s12
          %p148 = scmp.lt.s32.totalorder %s147, 63
          %s149 = scalar_select %p148, %s147, 63
          %s150 = smul.addr %s149, 4
          %s151 = scalar_lea.vmem %s1, %s150
          %s152 = smul.u32 32, %s12
        $region24: #{tpu_custom_call.1} parent=15 // pred_fallthru
          _
        // Predicated region
        $region25: #{tpu_custom_call.1} parent=15 // pred_check
          %p153 = pneg %p84
        $region26: #{tpu_custom_call.1} parent=15 // pred_check_branch
          %155 = sbr.rel (%p153) target = $region28
        $region27: #{tpu_custom_call.1} parent=15 // pred_region
          %s156 = smul.u32 32, %s12
          %p157 = scmp.lt.s32.totalorder %s156, 63
          %s158 = scalar_select %p157, %s156, 63
          %s159 = smul.addr %s158, 4
          %s160 = scalar_lea.vmem %s2, %s159
          %s161 = smul.u32 32, %s12
        $region28: #{tpu_custom_call.1} parent=15 // pred_fallthru
          _
      $region16: #{tpu_custom_call.1} parent=5 // pred_fallthru
        _
      %p162 = scmp.le.s32.totalorder 1, %s12
      %p163 = scmp.lt.s32.totalorder %s12, 3
      %p164 = pnand %p162, %p163
      %p165 = pneg %p164
      // Predicated region
      $region29: #{tpu_custom_call.1} parent=5 // pred_check
        _
      $region30: #{tpu_custom_call.1} parent=5 // pred_check_branch
        %167 = sbr.rel (%p164) target = $region32
      $region31: #{tpu_custom_call.1} parent=5 // pred_region
        %s168 = ssub.s32 %s12, 1
        %s169 = smul.u32 32, %s17
        %p170 = scmp.lt.s32.totalorder %s169, 63
        %s171 = scalar_select %p170, %s169, 63
        %s172 = smul.addr %s171, 4
        %s173 = scalar_lea.vmem %s0, %s172
        %p174 = pneg %p38
        %p175 = pneg %p35
        %s176 = smul.u32 32, %s17
        %p177 = scmp.lt.s32.totalorder %s176, 63
        %s178 = scalar_select %p177, %s176, 63
        %s179 = smul.addr %s178, 4
        %s180 = scalar_lea.vmem %s1, %s179
        %p181 = pneg %p64
        %p182 = pneg %p61
        %s183 = smul.u32 32, %s17
        %p184 = scmp.lt.s32.totalorder %s183, 63
        %s185 = scalar_select %p184, %s183, 63
        %s186 = smul.addr %s185, 4
        %s187 = scalar_lea.vmem %s2, %s186
        %p188 = pneg %p90
        %p189 = pneg %p87
        %p190 = pneg %p116
        %p191 = pneg %p113
        %s192 = sand.u32 %s103, 1
        %s193 = scalar_lea.sflag [#allocation3], %s192
        %s194 = sand.u32 %s103, 1
        %s195 = smul.addr %s194, 128
        %s196 = scalar_lea.vmem [#allocation2], %s195
        %s197 = smul.u32 32, %s17
        %p198 = scmp.lt.s32.totalorder %s197, 63
        %s199 = scalar_select %p198, %s197, 63
        %s200 = smul.addr %s199, 4
        %s201 = scalar_lea.vmem %s0, %s200
        %s202 = smul.u32 32, %s17
        %s203 = smul.u32 32, %s17
        %p204 = scmp.lt.s32.totalorder %s203, 63
        %s205 = scalar_select %p204, %s203, 63
        %s206 = smul.addr %s205, 4
        %s207 = scalar_lea.vmem %s1, %s206
        %s208 = smul.u32 32, %s17
        %s209 = smul.u32 32, %s17
        %p210 = scmp.lt.s32.totalorder %s209, 63
        %s211 = scalar_select %p210, %s209, 63
        %s212 = smul.addr %s211, 4
        %s213 = scalar_lea.vmem %s2, %s212
        %s214 = smul.u32 32, %s17
        %s215 = smul.u32 32, %s17
        %v216 = vld [vmem:[%s201] sm:$0xf]
        %v217 = vld [vmem:[%s201 + $0x4] sm:$0xf]
        %v218 = vld [vmem:[%s201 + $0x8] sm:$0xf]
        %v219 = vld [vmem:[%s201 + $0xc] sm:$0xf]
        %v220 = vld [vmem:[%s201 + $0x10] sm:$0xf]
        %v221 = vld [vmem:[%s201 + $0x14] sm:$0xf]
        %v222 = vld [vmem:[%s201 + $0x18] sm:$0xf]
        %v223 = vld [vmem:[%s201 + $0x1c] sm:$0xf]
        %v224 = vld [vmem:[%s201 + $0x20] sm:$0xf]
        %v225 = vld [vmem:[%s201 + $0x24] sm:$0xf]
        %v226 = vld [vmem:[%s201 + $0x28] sm:$0xf]
        %v227 = vld [vmem:[%s201 + $0x2c] sm:$0xf]
        %v228 = vld [vmem:[%s201 + $0x30] sm:$0xf]
        %v229 = vld [vmem:[%s201 + $0x34] sm:$0xf]
        %v230 = vld [vmem:[%s201 + $0x38] sm:$0xf]
        %v231 = vld [vmem:[%s201 + $0x3c] sm:$0xf]
        %v232 = vld [vmem:[%s201 + $0x40] sm:$0xf]
        %v233 = vld [vmem:[%s201 + $0x44] sm:$0xf]
        %v234 = vld [vmem:[%s201 + $0x48] sm:$0xf]
        %v235 = vld [vmem:[%s201 + $0x4c] sm:$0xf]
        %v236 = vld [vmem:[%s201 + $0x50] sm:$0xf]
        %v237 = vld [vmem:[%s201 + $0x54] sm:$0xf]
        %v238 = vld [vmem:[%s201 + $0x58] sm:$0xf]
        %v239 = vld [vmem:[%s201 + $0x5c] sm:$0xf]
        %v240 = vld [vmem:[%s201 + $0x60] sm:$0xf]
        %v241 = vld [vmem:[%s201 + $0x64] sm:$0xf]
        %v242 = vld [vmem:[%s201 + $0x68] sm:$0xf]
        %v243 = vld [vmem:[%s201 + $0x6c] sm:$0xf]
        %v244 = vld [vmem:[%s201 + $0x70] sm:$0xf]
        %v245 = vld [vmem:[%s201 + $0x74] sm:$0xf]
        %v246 = vld [vmem:[%s201 + $0x78] sm:$0xf]
        %v247 = vld [vmem:[%s201 + $0x7c] sm:$0xf]
        %vm248 = vcmask 1043456
        %v249 = vsel %vm248, %v216, 0.0
        %250 = vadd.xlane.f32.xlu0 %v249
        %v251 = vpop.xlane.xlu0 %250
        %v252 = vsel %vm248, %v217, 0.0
        %253 = vadd.xlane.f32.xlu0 %v252
        %v254 = vpop.xlane.xlu0 %253
        %v255 = vsel %vm248, %v218, 0.0
        %256 = vadd.xlane.f32.xlu0 %v255
        %v257 = vpop.xlane.xlu0 %256
        %v258 = vsel %vm248, %v219, 0.0
        %259 = vadd.xlane.f32.xlu0 %v258
        %v260 = vpop.xlane.xlu0 %259
        %v261 = vsel %vm248, %v220, 0.0
        %262 = vadd.xlane.f32.xlu0 %v261
        %v263 = vpop.xlane.xlu0 %262
        %v264 = vsel %vm248, %v221, 0.0
        %265 = vadd.xlane.f32.xlu0 %v264
        %v266 = vpop.xlane.xlu0 %265
        %v267 = vsel %vm248, %v222, 0.0
        %268 = vadd.xlane.f32.xlu0 %v267
        %v269 = vpop.xlane.xlu0 %268
        %v270 = vsel %vm248, %v223, 0.0
        %271 = vadd.xlane.f32.xlu0 %v270
        %v272 = vpop.xlane.xlu0 %271
        %v273 = vsel %vm248, %v224, 0.0
        %274 = vadd.xlane.f32.xlu0 %v273
        %v275 = vpop.xlane.xlu0 %274
        %v276 = vsel %vm248, %v225, 0.0
        %277 = vadd.xlane.f32.xlu0 %v276
        %v278 = vpop.xlane.xlu0 %277
        %v279 = vsel %vm248, %v226, 0.0
        %280 = vadd.xlane.f32.xlu0 %v279
        %v281 = vpop.xlane.xlu0 %280
        %v282 = vsel %vm248, %v227, 0.0
        %283 = vadd.xlane.f32.xlu0 %v282
        %v284 = vpop.xlane.xlu0 %283
        %v285 = vsel %vm248, %v228, 0.0
        %286 = vadd.xlane.f32.xlu0 %v285
        %v287 = vpop.xlane.xlu0 %286
        %v288 = vsel %vm248, %v229, 0.0
        %289 = vadd.xlane.f32.xlu0 %v288
        %v290 = vpop.xlane.xlu0 %289
        %v291 = vsel %vm248, %v230, 0.0
        %292 = vadd.xlane.f32.xlu0 %v291
        %v293 = vpop.xlane.xlu0 %292
        %v294 = vsel %vm248, %v231, 0.0
        %295 = vadd.xlane.f32.xlu0 %v294
        %v296 = vpop.xlane.xlu0 %295
        %v297 = vsel %vm248, %v232, 0.0
        %298 = vadd.xlane.f32.xlu0 %v297
        %v299 = vpop.xlane.xlu0 %298
        %v300 = vsel %vm248, %v233, 0.0
        %301 = vadd.xlane.f32.xlu0 %v300
        %v302 = vpop.xlane.xlu0 %301
        %v303 = vsel %vm248, %v234, 0.0
        %304 = vadd.xlane.f32.xlu0 %v303
        %v305 = vpop.xlane.xlu0 %304
        %v306 = vsel %vm248, %v235, 0.0
        %307 = vadd.xlane.f32.xlu0 %v306
        %v308 = vpop.xlane.xlu0 %307
        %v309 = vsel %vm248, %v236, 0.0
        %310 = vadd.xlane.f32.xlu0 %v309
        %v311 = vpop.xlane.xlu0 %310
        %v312 = vsel %vm248, %v237, 0.0
        %313 = vadd.xlane.f32.xlu0 %v312
        %v314 = vpop.xlane.xlu0 %313
        %v315 = vsel %vm248, %v238, 0.0
        %316 = vadd.xlane.f32.xlu0 %v315
        %v317 = vpop.xlane.xlu0 %316
        %v318 = vsel %vm248, %v239, 0.0
        %319 = vadd.xlane.f32.xlu0 %v318
        %v320 = vpop.xlane.xlu0 %319
        %v321 = vsel %vm248, %v240, 0.0
        %322 = vadd.xlane.f32.xlu0 %v321
        %v323 = vpop.xlane.xlu0 %322
        %v324 = vsel %vm248, %v241, 0.0
        %325 = vadd.xlane.f32.xlu0 %v324
        %v326 = vpop.xlane.xlu0 %325
        %v327 = vsel %vm248, %v242, 0.0
        %328 = vadd.xlane.f32.xlu0 %v327
        %v329 = vpop.xlane.xlu0 %328
        %v330 = vsel %vm248, %v243, 0.0
        %331 = vadd.xlane.f32.xlu0 %v330
        %v332 = vpop.xlane.xlu0 %331
        %v333 = vsel %vm248, %v244, 0.0
        %334 = vadd.xlane.f32.xlu0 %v333
        %v335 = vpop.xlane.xlu0 %334
        %v336 = vsel %vm248, %v245, 0.0
        %337 = vadd.xlane.f32.xlu0 %v336
        %v338 = vpop.xlane.xlu0 %337
        %v339 = vsel %vm248, %v246, 0.0
        %340 = vadd.xlane.f32.xlu0 %v339
        %v341 = vpop.xlane.xlu0 %340
        %v342 = vsel %vm248, %v247, 0.0
        %343 = vadd.xlane.f32.xlu0 %v342
        %v344 = vpop.xlane.xlu0 %343
        %v345 = vsel %vm248, %v251, 0.0
        %v346 = vrot.slane %v345, 4
        %v347 = vadd.f32 %v345, %v346
        %v348 = vrot.slane %v347, 2
        %v349 = vadd.f32 %v347, %v348
        %v350 = vrot.slane %v349, 1
        %v351 = vadd.f32 %v349, %v350
        %v352 = vsel %vm248, %v254, 0.0
        %v353 = vrot.slane %v352, 4
        %v354 = vadd.f32 %v352, %v353
        %v355 = vrot.slane %v354, 2
        %v356 = vadd.f32 %v354, %v355
        %v357 = vrot.slane %v356, 1
        %v358 = vadd.f32 %v356, %v357
        %v359 = vsel %vm248, %v257, 0.0
        %v360 = vrot.slane %v359, 4
        %v361 = vadd.f32 %v359, %v360
        %v362 = vrot.slane %v361, 2
        %v363 = vadd.f32 %v361, %v362
        %v364 = vrot.slane %v363, 1
        %v365 = vadd.f32 %v363, %v364
        %v366 = vsel %vm248, %v260, 0.0
        %v367 = vrot.slane %v366, 4
        %v368 = vadd.f32 %v366, %v367
        %v369 = vrot.slane %v368, 2
        %v370 = vadd.f32 %v368, %v369
        %v371 = vrot.slane %v370, 1
        %v372 = vadd.f32 %v370, %v371
        %v373 = vsel %vm248, %v263, 0.0
        %v374 = vrot.slane %v373, 4
        %v375 = vadd.f32 %v373, %v374
        %v376 = vrot.slane %v375, 2
        %v377 = vadd.f32 %v375, %v376
        %v378 = vrot.slane %v377, 1
        %v379 = vadd.f32 %v377, %v378
        %v380 = vsel %vm248, %v266, 0.0
        %v381 = vrot.slane %v380, 4
        %v382 = vadd.f32 %v380, %v381
        %v383 = vrot.slane %v382, 2
        %v384 = vadd.f32 %v382, %v383
        %v385 = vrot.slane %v384, 1
        %v386 = vadd.f32 %v384, %v385
        %v387 = vsel %vm248, %v269, 0.0
        %v388 = vrot.slane %v387, 4
        %v389 = vadd.f32 %v387, %v388
        %v390 = vrot.slane %v389, 2
        %v391 = vadd.f32 %v389, %v390
        %v392 = vrot.slane %v391, 1
        %v393 = vadd.f32 %v391, %v392
        %v394 = vsel %vm248, %v272, 0.0
        %v395 = vrot.slane %v394, 4
        %v396 = vadd.f32 %v394, %v395
        %v397 = vrot.slane %v396, 2
        %v398 = vadd.f32 %v396, %v397
        %v399 = vrot.slane %v398, 1
        %v400 = vadd.f32 %v398, %v399
        %v401 = vsel %vm248, %v275, 0.0
        %v402 = vrot.slane %v401, 4
        %v403 = vadd.f32 %v401, %v402
        %v404 = vrot.slane %v403, 2
        %v405 = vadd.f32 %v403, %v404
        %v406 = vrot.slane %v405, 1
        %v407 = vadd.f32 %v405, %v406
        %v408 = vsel %vm248, %v278, 0.0
        %v409 = vrot.slane %v408, 4
        %v410 = vadd.f32 %v408, %v409
        %v411 = vrot.slane %v410, 2
        %v412 = vadd.f32 %v410, %v411
        %v413 = vrot.slane %v412, 1
        %v414 = vadd.f32 %v412, %v413
        %v415 = vsel %vm248, %v281, 0.0
        %v416 = vrot.slane %v415, 4
        %v417 = vadd.f32 %v415, %v416
        %v418 = vrot.slane %v417, 2
        %v419 = vadd.f32 %v417, %v418
        %v420 = vrot.slane %v419, 1
        %v421 = vadd.f32 %v419, %v420
        %v422 = vsel %vm248, %v284, 0.0
        %v423 = vrot.slane %v422, 4
        %v424 = vadd.f32 %v422, %v423
        %v425 = vrot.slane %v424, 2
        %v426 = vadd.f32 %v424, %v425
        %v427 = vrot.slane %v426, 1
        %v428 = vadd.f32 %v426, %v427
        %v429 = vsel %vm248, %v287, 0.0
        %v430 = vrot.slane %v429, 4
        %v431 = vadd.f32 %v429, %v430
        %v432 = vrot.slane %v431, 2
        %v433 = vadd.f32 %v431, %v432
        %v434 = vrot.slane %v433, 1
        %v435 = vadd.f32 %v433, %v434
        %v436 = vsel %vm248, %v290, 0.0
        %v437 = vrot.slane %v436, 4
        %v438 = vadd.f32 %v436, %v437
        %v439 = vrot.slane %v438, 2
        %v440 = vadd.f32 %v438, %v439
        %v441 = vrot.slane %v440, 1
        %v442 = vadd.f32 %v440, %v441
        %v443 = vsel %vm248, %v293, 0.0
        %v444 = vrot.slane %v443, 4
        %v445 = vadd.f32 %v443, %v444
        %v446 = vrot.slane %v445, 2
        %v447 = vadd.f32 %v445, %v446
        %v448 = vrot.slane %v447, 1
        %v449 = vadd.f32 %v447, %v448
        %v450 = vsel %vm248, %v296, 0.0
        %v451 = vrot.slane %v450, 4
        %v452 = vadd.f32 %v450, %v451
        %v453 = vrot.slane %v452, 2
        %v454 = vadd.f32 %v452, %v453
        %v455 = vrot.slane %v454, 1
        %v456 = vadd.f32 %v454, %v455
        %v457 = vsel %vm248, %v299, 0.0
        %v458 = vrot.slane %v457, 4
        %v459 = vadd.f32 %v457, %v458
        %v460 = vrot.slane %v459, 2
        %v461 = vadd.f32 %v459, %v460
        %v462 = vrot.slane %v461, 1
        %v463 = vadd.f32 %v461, %v462
        %v464 = vsel %vm248, %v302, 0.0
        %v465 = vrot.slane %v464, 4
        %v466 = vadd.f32 %v464, %v465
        %v467 = vrot.slane %v466, 2
        %v468 = vadd.f32 %v466, %v467
        %v469 = vrot.slane %v468, 1
        %v470 = vadd.f32 %v468, %v469
        %v471 = vsel %vm248, %v305, 0.0
        %v472 = vrot.slane %v471, 4
        %v473 = vadd.f32 %v471, %v472
        %v474 = vrot.slane %v473, 2
        %v475 = vadd.f32 %v473, %v474
        %v476 = vrot.slane %v475, 1
        %v477 = vadd.f32 %v475, %v476
        %v478 = vsel %vm248, %v308, 0.0
        %v479 = vrot.slane %v478, 4
        %v480 = vadd.f32 %v478, %v479
        %v481 = vrot.slane %v480, 2
        %v482 = vadd.f32 %v480, %v481
        %v483 = vrot.slane %v482, 1
        %v484 = vadd.f32 %v482, %v483
        %v485 = vsel %vm248, %v311, 0.0
        %v486 = vrot.slane %v485, 4
        %v487 = vadd.f32 %v485, %v486
        %v488 = vrot.slane %v487, 2
        %v489 = vadd.f32 %v487, %v488
        %v490 = vrot.slane %v489, 1
        %v491 = vadd.f32 %v489, %v490
        %v492 = vsel %vm248, %v314, 0.0
        %v493 = vrot.slane %v492, 4
        %v494 = vadd.f32 %v492, %v493
        %v495 = vrot.slane %v494, 2
        %v496 = vadd.f32 %v494, %v495
        %v497 = vrot.slane %v496, 1
        %v498 = vadd.f32 %v496, %v497
        %v499 = vsel %vm248, %v317, 0.0
        %v500 = vrot.slane %v499, 4
        %v501 = vadd.f32 %v499, %v500
        %v502 = vrot.slane %v501, 2
        %v503 = vadd.f32 %v501, %v502
        %v504 = vrot.slane %v503, 1
        %v505 = vadd.f32 %v503, %v504
        %v506 = vsel %vm248, %v320, 0.0
        %v507 = vrot.slane %v506, 4
        %v508 = vadd.f32 %v506, %v507
        %v509 = vrot.slane %v508, 2
        %v510 = vadd.f32 %v508, %v509
        %v511 = vrot.slane %v510, 1
        %v512 = vadd.f32 %v510, %v511
        %v513 = vsel %vm248, %v323, 0.0
        %v514 = vrot.slane %v513, 4
        %v515 = vadd.f32 %v513, %v514
        %v516 = vrot.slane %v515, 2
        %v517 = vadd.f32 %v515, %v516
        %v518 = vrot.slane %v517, 1
        %v519 = vadd.f32 %v517, %v518
        %v520 = vsel %vm248, %v326, 0.0
        %v521 = vrot.slane %v520, 4
        %v522 = vadd.f32 %v520, %v521
        %v523 = vrot.slane %v522, 2
        %v524 = vadd.f32 %v522, %v523
        %v525 = vrot.slane %v524, 1
        %v526 = vadd.f32 %v524, %v525
        %v527 = vsel %vm248, %v329, 0.0
        %v528 = vrot.slane %v527, 4
        %v529 = vadd.f32 %v527, %v528
        %v530 = vrot.slane %v529, 2
        %v531 = vadd.f32 %v529, %v530
        %v532 = vrot.slane %v531, 1
        %v533 = vadd.f32 %v531, %v532
        %v534 = vsel %vm248, %v332, 0.0
        %v535 = vrot.slane %v534, 4
        %v536 = vadd.f32 %v534, %v535
        %v537 = vrot.slane %v536, 2
        %v538 = vadd.f32 %v536, %v537
        %v539 = vrot.slane %v538, 1
        %v540 = vadd.f32 %v538, %v539
        %v541 = vsel %vm248, %v335, 0.0
        %v542 = vrot.slane %v541, 4
        %v543 = vadd.f32 %v541, %v542
        %v544 = vrot.slane %v543, 2
        %v545 = vadd.f32 %v543, %v544
        %v546 = vrot.slane %v545, 1
        %v547 = vadd.f32 %v545, %v546
        %v548 = vsel %vm248, %v338, 0.0
        %v549 = vrot.slane %v548, 4
        %v550 = vadd.f32 %v548, %v549
        %v551 = vrot.slane %v550, 2
        %v552 = vadd.f32 %v550, %v551
        %v553 = vrot.slane %v552, 1
        %v554 = vadd.f32 %v552, %v553
        %v555 = vsel %vm248, %v341, 0.0
        %v556 = vrot.slane %v555, 4
        %v557 = vadd.f32 %v555, %v556
        %v558 = vrot.slane %v557, 2
        %v559 = vadd.f32 %v557, %v558
        %v560 = vrot.slane %v559, 1
        %v561 = vadd.f32 %v559, %v560
        %v562 = vsel %vm248, %v344, 0.0
        %v563 = vrot.slane %v562, 4
        %v564 = vadd.f32 %v562, %v563
        %v565 = vrot.slane %v564, 2
        %v566 = vadd.f32 %v564, %v565
        %v567 = vrot.slane %v566, 1
        %v568 = vadd.f32 %v566, %v567
        %v569 = vmul.f32 %v216, %v216
        %v570 = vmul.f32 %v217, %v217
        %v571 = vmul.f32 %v218, %v218
        %v572 = vmul.f32 %v219, %v219
        %v573 = vmul.f32 %v220, %v220
        %v574 = vmul.f32 %v221, %v221
        %v575 = vmul.f32 %v222, %v222
        %v576 = vmul.f32 %v223, %v223
        %v577 = vmul.f32 %v224, %v224
        %v578 = vmul.f32 %v225, %v225
        %v579 = vmul.f32 %v226, %v226
        %v580 = vmul.f32 %v227, %v227
        %v581 = vmul.f32 %v228, %v228
        %v582 = vmul.f32 %v229, %v229
        %v583 = vmul.f32 %v230, %v230
        %v584 = vmul.f32 %v231, %v231
        %v585 = vmul.f32 %v232, %v232
        %v586 = vmul.f32 %v233, %v233
        %v587 = vmul.f32 %v234, %v234
        %v588 = vmul.f32 %v235, %v235
        %v589 = vmul.f32 %v236, %v236
        %v590 = vmul.f32 %v237, %v237
        %v591 = vmul.f32 %v238, %v238
        %v592 = vmul.f32 %v239, %v239
        %v593 = vmul.f32 %v240, %v240
        %v594 = vmul.f32 %v241, %v241
        %v595 = vmul.f32 %v242, %v242
        %v596 = vmul.f32 %v243, %v243
        %v597 = vmul.f32 %v244, %v244
        %v598 = vmul.f32 %v245, %v245
        %v599 = vmul.f32 %v246, %v246
        %v600 = vmul.f32 %v247, %v247
        %v601 = vsel %vm248, %v569, 0.0
        %602 = vadd.xlane.f32.xlu0 %v601
        %v603 = vpop.xlane.xlu0 %602
        %v604 = vsel %vm248, %v570, 0.0
        %605 = vadd.xlane.f32.xlu0 %v604
        %v606 = vpop.xlane.xlu0 %605
        %v607 = vsel %vm248, %v571, 0.0
        %608 = vadd.xlane.f32.xlu0 %v607
        %v609 = vpop.xlane.xlu0 %608
        %v610 = vsel %vm248, %v572, 0.0
        %611 = vadd.xlane.f32.xlu0 %v610
        %v612 = vpop.xlane.xlu0 %611
        %v613 = vsel %vm248, %v573, 0.0
        %614 = vadd.xlane.f32.xlu0 %v613
        %v615 = vpop.xlane.xlu0 %614
        %v616 = vsel %vm248, %v574, 0.0
        %617 = vadd.xlane.f32.xlu0 %v616
        %v618 = vpop.xlane.xlu0 %617
        %v619 = vsel %vm248, %v575, 0.0
        %620 = vadd.xlane.f32.xlu0 %v619
        %v621 = vpop.xlane.xlu0 %620
        %v622 = vsel %vm248, %v576, 0.0
        %623 = vadd.xlane.f32.xlu0 %v622
        %v624 = vpop.xlane.xlu0 %623
        %v625 = vsel %vm248, %v577, 0.0
        %626 = vadd.xlane.f32.xlu0 %v625
        %v627 = vpop.xlane.xlu0 %626
        %v628 = vsel %vm248, %v578, 0.0
        %629 = vadd.xlane.f32.xlu0 %v628
        %v630 = vpop.xlane.xlu0 %629
        %v631 = vsel %vm248, %v579, 0.0
        %632 = vadd.xlane.f32.xlu0 %v631
        %v633 = vpop.xlane.xlu0 %632
        %v634 = vsel %vm248, %v580, 0.0
        %635 = vadd.xlane.f32.xlu0 %v634
        %v636 = vpop.xlane.xlu0 %635
        %v637 = vsel %vm248, %v581, 0.0
        %638 = vadd.xlane.f32.xlu0 %v637
        %v639 = vpop.xlane.xlu0 %638
        %v640 = vsel %vm248, %v582, 0.0
        %641 = vadd.xlane.f32.xlu0 %v640
        %v642 = vpop.xlane.xlu0 %641
        %v643 = vsel %vm248, %v583, 0.0
        %644 = vadd.xlane.f32.xlu0 %v643
        %v645 = vpop.xlane.xlu0 %644
        %v646 = vsel %vm248, %v584, 0.0
        %647 = vadd.xlane.f32.xlu0 %v646
        %v648 = vpop.xlane.xlu0 %647
        %v649 = vsel %vm248, %v585, 0.0
        %650 = vadd.xlane.f32.xlu0 %v649
        %v651 = vpop.xlane.xlu0 %650
        %v652 = vsel %vm248, %v586, 0.0
        %653 = vadd.xlane.f32.xlu0 %v652
        %v654 = vpop.xlane.xlu0 %653
        %v655 = vsel %vm248, %v587, 0.0
        %656 = vadd.xlane.f32.xlu0 %v655
        %v657 = vpop.xlane.xlu0 %656
        %v658 = vsel %vm248, %v588, 0.0
        %659 = vadd.xlane.f32.xlu0 %v658
        %v660 = vpop.xlane.xlu0 %659
        %v661 = vsel %vm248, %v589, 0.0
        %662 = vadd.xlane.f32.xlu0 %v661
        %v663 = vpop.xlane.xlu0 %662
        %v664 = vsel %vm248, %v590, 0.0
        %665 = vadd.xlane.f32.xlu0 %v664
        %v666 = vpop.xlane.xlu0 %665
        %v667 = vsel %vm248, %v591, 0.0
        %668 = vadd.xlane.f32.xlu0 %v667
        %v669 = vpop.xlane.xlu0 %668
        %v670 = vsel %vm248, %v592, 0.0
        %671 = vadd.xlane.f32.xlu0 %v670
        %v672 = vpop.xlane.xlu0 %671
        %v673 = vsel %vm248, %v593, 0.0
        %674 = vadd.xlane.f32.xlu0 %v673
        %v675 = vpop.xlane.xlu0 %674
        %v676 = vsel %vm248, %v594, 0.0
        %677 = vadd.xlane.f32.xlu0 %v676
        %v678 = vpop.xlane.xlu0 %677
        %v679 = vsel %vm248, %v595, 0.0
        %680 = vadd.xlane.f32.xlu0 %v679
        %v681 = vpop.xlane.xlu0 %680
        %v682 = vsel %vm248, %v596, 0.0
        %683 = vadd.xlane.f32.xlu0 %v682
        %v684 = vpop.xlane.xlu0 %683
        %v685 = vsel %vm248, %v597, 0.0
        %686 = vadd.xlane.f32.xlu0 %v685
        %v687 = vpop.xlane.xlu0 %686
        %v688 = vsel %vm248, %v598, 0.0
        %689 = vadd.xlane.f32.xlu0 %v688
        %v690 = vpop.xlane.xlu0 %689
        %v691 = vsel %vm248, %v599, 0.0
        %692 = vadd.xlane.f32.xlu0 %v691
        %v693 = vpop.xlane.xlu0 %692
        %v694 = vsel %vm248, %v600, 0.0
        %695 = vadd.xlane.f32.xlu0 %v694
        %v696 = vpop.xlane.xlu0 %695
        %v697 = vsel %vm248, %v603, 0.0
        %v698 = vrot.slane %v697, 4
        %v699 = vadd.f32 %v697, %v698
        %v700 = vrot.slane %v699, 2
        %v701 = vadd.f32 %v699, %v700
        %v702 = vrot.slane %v701, 1
        %v703 = vadd.f32 %v701, %v702
        %v704 = vsel %vm248, %v606, 0.0
        %v705 = vrot.slane %v704, 4
        %v706 = vadd.f32 %v704, %v705
        %v707 = vrot.slane %v706, 2
        %v708 = vadd.f32 %v706, %v707
        %v709 = vrot.slane %v708, 1
        %v710 = vadd.f32 %v708, %v709
        %v711 = vsel %vm248, %v609, 0.0
        %v712 = vrot.slane %v711, 4
        %v713 = vadd.f32 %v711, %v712
        %v714 = vrot.slane %v713, 2
        %v715 = vadd.f32 %v713, %v714
        %v716 = vrot.slane %v715, 1
        %v717 = vadd.f32 %v715, %v716
        %v718 = vsel %vm248, %v612, 0.0
        %v719 = vrot.slane %v718, 4
        %v720 = vadd.f32 %v718, %v719
        %v721 = vrot.slane %v720, 2
        %v722 = vadd.f32 %v720, %v721
        %v723 = vrot.slane %v722, 1
        %v724 = vadd.f32 %v722, %v723
        %v725 = vsel %vm248, %v615, 0.0
        %v726 = vrot.slane %v725, 4
        %v727 = vadd.f32 %v725, %v726
        %v728 = vrot.slane %v727, 2
        %v729 = vadd.f32 %v727, %v728
        %v730 = vrot.slane %v729, 1
        %v731 = vadd.f32 %v729, %v730
        %v732 = vsel %vm248, %v618, 0.0
        %v733 = vrot.slane %v732, 4
        %v734 = vadd.f32 %v732, %v733
        %v735 = vrot.slane %v734, 2
        %v736 = vadd.f32 %v734, %v735
        %v737 = vrot.slane %v736, 1
        %v738 = vadd.f32 %v736, %v737
        %v739 = vsel %vm248, %v621, 0.0
        %v740 = vrot.slane %v739, 4
        %v741 = vadd.f32 %v739, %v740
        %v742 = vrot.slane %v741, 2
        %v743 = vadd.f32 %v741, %v742
        %v744 = vrot.slane %v743, 1
        %v745 = vadd.f32 %v743, %v744
        %v746 = vsel %vm248, %v624, 0.0
        %v747 = vrot.slane %v746, 4
        %v748 = vadd.f32 %v746, %v747
        %v749 = vrot.slane %v748, 2
        %v750 = vadd.f32 %v748, %v749
        %v751 = vrot.slane %v750, 1
        %v752 = vadd.f32 %v750, %v751
        %v753 = vsel %vm248, %v627, 0.0
        %v754 = vrot.slane %v753, 4
        %v755 = vadd.f32 %v753, %v754
        %v756 = vrot.slane %v755, 2
        %v757 = vadd.f32 %v755, %v756
        %v758 = vrot.slane %v757, 1
        %v759 = vadd.f32 %v757, %v758
        %v760 = vsel %vm248, %v630, 0.0
        %v761 = vrot.slane %v760, 4
        %v762 = vadd.f32 %v760, %v761
        %v763 = vrot.slane %v762, 2
        %v764 = vadd.f32 %v762, %v763
        %v765 = vrot.slane %v764, 1
        %v766 = vadd.f32 %v764, %v765
        %v767 = vsel %vm248, %v633, 0.0
        %v768 = vrot.slane %v767, 4
        %v769 = vadd.f32 %v767, %v768
        %v770 = vrot.slane %v769, 2
        %v771 = vadd.f32 %v769, %v770
        %v772 = vrot.slane %v771, 1
        %v773 = vadd.f32 %v771, %v772
        %v774 = vsel %vm248, %v636, 0.0
        %v775 = vrot.slane %v774, 4
        %v776 = vadd.f32 %v774, %v775
        %v777 = vrot.slane %v776, 2
        %v778 = vadd.f32 %v776, %v777
        %v779 = vrot.slane %v778, 1
        %v780 = vadd.f32 %v778, %v779
        %v781 = vsel %vm248, %v639, 0.0
        %v782 = vrot.slane %v781, 4
        %v783 = vadd.f32 %v781, %v782
        %v784 = vrot.slane %v783, 2
        %v785 = vadd.f32 %v783, %v784
        %v786 = vrot.slane %v785, 1
        %v787 = vadd.f32 %v785, %v786
        %v788 = vsel %vm248, %v642, 0.0
        %v789 = vrot.slane %v788, 4
        %v790 = vadd.f32 %v788, %v789
        %v791 = vrot.slane %v790, 2
        %v792 = vadd.f32 %v790, %v791
        %v793 = vrot.slane %v792, 1
        %v794 = vadd.f32 %v792, %v793
        %v795 = vsel %vm248, %v645, 0.0
        %v796 = vrot.slane %v795, 4
        %v797 = vadd.f32 %v795, %v796
        %v798 = vrot.slane %v797, 2
        %v799 = vadd.f32 %v797, %v798
        %v800 = vrot.slane %v799, 1
        %v801 = vadd.f32 %v799, %v800
        %v802 = vsel %vm248, %v648, 0.0
        %v803 = vrot.slane %v802, 4
        %v804 = vadd.f32 %v802, %v803
        %v805 = vrot.slane %v804, 2
        %v806 = vadd.f32 %v804, %v805
        %v807 = vrot.slane %v806, 1
        %v808 = vadd.f32 %v806, %v807
        %v809 = vsel %vm248, %v651, 0.0
        %v810 = vrot.slane %v809, 4
        %v811 = vadd.f32 %v809, %v810
        %v812 = vrot.slane %v811, 2
        %v813 = vadd.f32 %v811, %v812
        %v814 = vrot.slane %v813, 1
        %v815 = vadd.f32 %v813, %v814
        %v816 = vsel %vm248, %v654, 0.0
        %v817 = vrot.slane %v816, 4
        %v818 = vadd.f32 %v816, %v817
        %v819 = vrot.slane %v818, 2
        %v820 = vadd.f32 %v818, %v819
        %v821 = vrot.slane %v820, 1
        %v822 = vadd.f32 %v820, %v821
        %v823 = vsel %vm248, %v657, 0.0
        %v824 = vrot.slane %v823, 4
        %v825 = vadd.f32 %v823, %v824
        %v826 = vrot.slane %v825, 2
        %v827 = vadd.f32 %v825, %v826
        %v828 = vrot.slane %v827, 1
        %v829 = vadd.f32 %v827, %v828
        %v830 = vsel %vm248, %v660, 0.0
        %v831 = vrot.slane %v830, 4
        %v832 = vadd.f32 %v830, %v831
        %v833 = vrot.slane %v832, 2
        %v834 = vadd.f32 %v832, %v833
        %v835 = vrot.slane %v834, 1
        %v836 = vadd.f32 %v834, %v835
        %v837 = vsel %vm248, %v663, 0.0
        %v838 = vrot.slane %v837, 4
        %v839 = vadd.f32 %v837, %v838
        %v840 = vrot.slane %v839, 2
        %v841 = vadd.f32 %v839, %v840
        %v842 = vrot.slane %v841, 1
        %v843 = vadd.f32 %v841, %v842
        %v844 = vsel %vm248, %v666, 0.0
        %v845 = vrot.slane %v844, 4
        %v846 = vadd.f32 %v844, %v845
        %v847 = vrot.slane %v846, 2
        %v848 = vadd.f32 %v846, %v847
        %v849 = vrot.slane %v848, 1
        %v850 = vadd.f32 %v848, %v849
        %v851 = vsel %vm248, %v669, 0.0
        %v852 = vrot.slane %v851, 4
        %v853 = vadd.f32 %v851, %v852
        %v854 = vrot.slane %v853, 2
        %v855 = vadd.f32 %v853, %v854
        %v856 = vrot.slane %v855, 1
        %v857 = vadd.f32 %v855, %v856
        %v858 = vsel %vm248, %v672, 0.0
        %v859 = vrot.slane %v858, 4
        %v860 = vadd.f32 %v858, %v859
        %v861 = vrot.slane %v860, 2
        %v862 = vadd.f32 %v860, %v861
        %v863 = vrot.slane %v862, 1
        %v864 = vadd.f32 %v862, %v863
        %v865 = vsel %vm248, %v675, 0.0
        %v866 = vrot.slane %v865, 4
        %v867 = vadd.f32 %v865, %v866
        %v868 = vrot.slane %v867, 2
        %v869 = vadd.f32 %v867, %v868
        %v870 = vrot.slane %v869, 1
        %v871 = vadd.f32 %v869, %v870
        %v872 = vsel %vm248, %v678, 0.0
        %v873 = vrot.slane %v872, 4
        %v874 = vadd.f32 %v872, %v873
        %v875 = vrot.slane %v874, 2
        %v876 = vadd.f32 %v874, %v875
        %v877 = vrot.slane %v876, 1
        %v878 = vadd.f32 %v876, %v877
        %v879 = vsel %vm248, %v681, 0.0
        %v880 = vrot.slane %v879, 4
        %v881 = vadd.f32 %v879, %v880
        %v882 = vrot.slane %v881, 2
        %v883 = vadd.f32 %v881, %v882
        %v884 = vrot.slane %v883, 1
        %v885 = vadd.f32 %v883, %v884
        %v886 = vsel %vm248, %v684, 0.0
        %v887 = vrot.slane %v886, 4
        %v888 = vadd.f32 %v886, %v887
        %v889 = vrot.slane %v888, 2
        %v890 = vadd.f32 %v888, %v889
        %v891 = vrot.slane %v890, 1
        %v892 = vadd.f32 %v890, %v891
        %v893 = vsel %vm248, %v687, 0.0
        %v894 = vrot.slane %v893, 4
        %v895 = vadd.f32 %v893, %v894
        %v896 = vrot.slane %v895, 2
        %v897 = vadd.f32 %v895, %v896
        %v898 = vrot.slane %v897, 1
        %v899 = vadd.f32 %v897, %v898
        %v900 = vsel %vm248, %v690, 0.0
        %v901 = vrot.slane %v900, 4
        %v902 = vadd.f32 %v900, %v901
        %v903 = vrot.slane %v902, 2
        %v904 = vadd.f32 %v902, %v903
        %v905 = vrot.slane %v904, 1
        %v906 = vadd.f32 %v904, %v905
        %v907 = vsel %vm248, %v693, 0.0
        %v908 = vrot.slane %v907, 4
        %v909 = vadd.f32 %v907, %v908
        %v910 = vrot.slane %v909, 2
        %v911 = vadd.f32 %v909, %v910
        %v912 = vrot.slane %v911, 1
        %v913 = vadd.f32 %v911, %v912
        %v914 = vsel %vm248, %v696, 0.0
        %v915 = vrot.slane %v914, 4
        %v916 = vadd.f32 %v914, %v915
        %v917 = vrot.slane %v916, 2
        %v918 = vadd.f32 %v916, %v917
        %v919 = vrot.slane %v918, 1
        %v920 = vadd.f32 %v918, %v919
        %v921 = vmul.f32 %v351, 0.001953125
        %v922 = vmul.f32 %v358, 0.001953125
        %v923 = vmul.f32 %v365, 0.001953125
        %v924 = vmul.f32 %v372, 0.001953125
        %v925 = vmul.f32 %v379, 0.001953125
        %v926 = vmul.f32 %v386, 0.001953125
        %v927 = vmul.f32 %v393, 0.001953125
        %v928 = vmul.f32 %v400, 0.001953125
        %v929 = vmul.f32 %v407, 0.001953125
        %v930 = vmul.f32 %v414, 0.001953125
        %v931 = vmul.f32 %v421, 0.001953125
        %v932 = vmul.f32 %v428, 0.001953125
        %v933 = vmul.f32 %v435, 0.001953125
        %v934 = vmul.f32 %v442, 0.001953125
        %v935 = vmul.f32 %v449, 0.001953125
        %v936 = vmul.f32 %v456, 0.001953125
        %v937 = vmul.f32 %v463, 0.001953125
        %v938 = vmul.f32 %v470, 0.001953125
        %v939 = vmul.f32 %v477, 0.001953125
        %v940 = vmul.f32 %v484, 0.001953125
        %v941 = vmul.f32 %v491, 0.001953125
        %v942 = vmul.f32 %v498, 0.001953125
        %v943 = vmul.f32 %v505, 0.001953125
        %v944 = vmul.f32 %v512, 0.001953125
        %v945 = vmul.f32 %v519, 0.001953125
        %v946 = vmul.f32 %v526, 0.001953125
        %v947 = vmul.f32 %v533, 0.001953125
        %v948 = vmul.f32 %v540, 0.001953125
        %v949 = vmul.f32 %v547, 0.001953125
        %v950 = vmul.f32 %v554, 0.001953125
        %v951 = vmul.f32 %v561, 0.001953125
        %v952 = vmul.f32 %v568, 0.001953125
        %v953 = vmul.f32 %v703, 0.001953125
        %v954 = vmul.f32 %v710, 0.001953125
        %v955 = vmul.f32 %v717, 0.001953125
        %v956 = vmul.f32 %v724, 0.001953125
        %v957 = vmul.f32 %v731, 0.001953125
        %v958 = vmul.f32 %v738, 0.001953125
        %v959 = vmul.f32 %v745, 0.001953125
        %v960 = vmul.f32 %v752, 0.001953125
        %v961 = vmul.f32 %v759, 0.001953125
        %v962 = vmul.f32 %v766, 0.001953125
        %v963 = vmul.f32 %v773, 0.001953125
        %v964 = vmul.f32 %v780, 0.001953125
        %v965 = vmul.f32 %v787, 0.001953125
        %v966 = vmul.f32 %v794, 0.001953125
        %v967 = vmul.f32 %v801, 0.001953125
        %v968 = vmul.f32 %v808, 0.001953125
        %v969 = vmul.f32 %v815, 0.001953125
        %v970 = vmul.f32 %v822, 0.001953125
        %v971 = vmul.f32 %v829, 0.001953125
        %v972 = vmul.f32 %v836, 0.001953125
        %v973 = vmul.f32 %v843, 0.001953125
        %v974 = vmul.f32 %v850, 0.001953125
        %v975 = vmul.f32 %v857, 0.001953125
        %v976 = vmul.f32 %v864, 0.001953125
        %v977 = vmul.f32 %v871, 0.001953125
        %v978 = vmul.f32 %v878, 0.001953125
        %v979 = vmul.f32 %v885, 0.001953125
        %v980 = vmul.f32 %v892, 0.001953125
        %v981 = vmul.f32 %v899, 0.001953125
        %v982 = vmul.f32 %v906, 0.001953125
        %v983 = vmul.f32 %v913, 0.001953125
        %v984 = vmul.f32 %v920, 0.001953125
        %v985 = vmul.f32 %v921, %v921
        %v986 = vmul.f32 %v922, %v922
        %v987 = vmul.f32 %v923, %v923
        %v988 = vmul.f32 %v924, %v924
        %v989 = vmul.f32 %v925, %v925
        %v990 = vmul.f32 %v926, %v926
        %v991 = vmul.f32 %v927, %v927
        %v992 = vmul.f32 %v928, %v928
        %v993 = vmul.f32 %v929, %v929
        %v994 = vmul.f32 %v930, %v930
        %v995 = vmul.f32 %v931, %v931
        %v996 = vmul.f32 %v932, %v932
        %v997 = vmul.f32 %v933, %v933
        %v998 = vmul.f32 %v934, %v934
        %v999 = vmul.f32 %v935, %v935
        %v1000 = vmul.f32 %v936, %v936
        %v1001 = vmul.f32 %v937, %v937
        %v1002 = vmul.f32 %v938, %v938
        %v1003 = vmul.f32 %v939, %v939
        %v1004 = vmul.f32 %v940, %v940
        %v1005 = vmul.f32 %v941, %v941
        %v1006 = vmul.f32 %v942, %v942
        %v1007 = vmul.f32 %v943, %v943
        %v1008 = vmul.f32 %v944, %v944
        %v1009 = vmul.f32 %v945, %v945
        %v1010 = vmul.f32 %v946, %v946
        %v1011 = vmul.f32 %v947, %v947
        %v1012 = vmul.f32 %v948, %v948
        %v1013 = vmul.f32 %v949, %v949
        %v1014 = vmul.f32 %v950, %v950
        %v1015 = vmul.f32 %v951, %v951
        %v1016 = vmul.f32 %v952, %v952
        %v1017 = vsub.f32 %v953, %v985
        %v1018 = vsub.f32 %v954, %v986
        %v1019 = vsub.f32 %v955, %v987
        %v1020 = vsub.f32 %v956, %v988
        %v1021 = vsub.f32 %v957, %v989
        %v1022 = vsub.f32 %v958, %v990
        %v1023 = vsub.f32 %v959, %v991
        %v1024 = vsub.f32 %v960, %v992
        %v1025 = vsub.f32 %v961, %v993
        %v1026 = vsub.f32 %v962, %v994
        %v1027 = vsub.f32 %v963, %v995
        %v1028 = vsub.f32 %v964, %v996
        %v1029 = vsub.f32 %v965, %v997
        %v1030 = vsub.f32 %v966, %v998
        %v1031 = vsub.f32 %v967, %v999
        %v1032 = vsub.f32 %v968, %v1000
        %v1033 = vsub.f32 %v969, %v1001
        %v1034 = vsub.f32 %v970, %v1002
        %v1035 = vsub.f32 %v971, %v1003
        %v1036 = vsub.f32 %v972, %v1004
        %v1037 = vsub.f32 %v973, %v1005
        %v1038 = vsub.f32 %v974, %v1006
        %v1039 = vsub.f32 %v975, %v1007
        %v1040 = vsub.f32 %v976, %v1008
        %v1041 = vsub.f32 %v977, %v1009
        %v1042 = vsub.f32 %v978, %v1010
        %v1043 = vsub.f32 %v979, %v1011
        %v1044 = vsub.f32 %v980, %v1012
        %v1045 = vsub.f32 %v981, %v1013
        %v1046 = vsub.f32 %v982, %v1014
        %v1047 = vsub.f32 %v983, %v1015
        %v1048 = vsub.f32 %v984, %v1016
        %v1049 = vmax.f32 %v1017, 0.0
        %v1050 = vmax.f32 %v1018, 0.0
        %v1051 = vmax.f32 %v1019, 0.0
        %v1052 = vmax.f32 %v1020, 0.0
        %v1053 = vmax.f32 %v1021, 0.0
        %v1054 = vmax.f32 %v1022, 0.0
        %v1055 = vmax.f32 %v1023, 0.0
        %v1056 = vmax.f32 %v1024, 0.0
        %v1057 = vmax.f32 %v1025, 0.0
        %v1058 = vmax.f32 %v1026, 0.0
        %v1059 = vmax.f32 %v1027, 0.0
        %v1060 = vmax.f32 %v1028, 0.0
        %v1061 = vmax.f32 %v1029, 0.0
        %v1062 = vmax.f32 %v1030, 0.0
        %v1063 = vmax.f32 %v1031, 0.0
        %v1064 = vmax.f32 %v1032, 0.0
        %v1065 = vmax.f32 %v1033, 0.0
        %v1066 = vmax.f32 %v1034, 0.0
        %v1067 = vmax.f32 %v1035, 0.0
        %v1068 = vmax.f32 %v1036, 0.0
        %v1069 = vmax.f32 %v1037, 0.0
        %v1070 = vmax.f32 %v1038, 0.0
        %v1071 = vmax.f32 %v1039, 0.0
        %v1072 = vmax.f32 %v1040, 0.0
        %v1073 = vmax.f32 %v1041, 0.0
        %v1074 = vmax.f32 %v1042, 0.0
        %v1075 = vmax.f32 %v1043, 0.0
        %v1076 = vmax.f32 %v1044, 0.0
        %v1077 = vmax.f32 %v1045, 0.0
        %v1078 = vmax.f32 %v1046, 0.0
        %v1079 = vmax.f32 %v1047, 0.0
        %v1080 = vmax.f32 %v1048, 0.0
        %v1081 = vadd.f32 %v1049, 1e-06
        %v1082 = vadd.f32 %v1050, 1e-06
        %v1083 = vadd.f32 %v1051, 1e-06
        %v1084 = vadd.f32 %v1052, 1e-06
        %v1085 = vadd.f32 %v1053, 1e-06
        %v1086 = vadd.f32 %v1054, 1e-06
        %v1087 = vadd.f32 %v1055, 1e-06
        %v1088 = vadd.f32 %v1056, 1e-06
        %v1089 = vadd.f32 %v1057, 1e-06
        %v1090 = vadd.f32 %v1058, 1e-06
        %v1091 = vadd.f32 %v1059, 1e-06
        %v1092 = vadd.f32 %v1060, 1e-06
        %v1093 = vadd.f32 %v1061, 1e-06
        %v1094 = vadd.f32 %v1062, 1e-06
        %v1095 = vadd.f32 %v1063, 1e-06
        %v1096 = vadd.f32 %v1064, 1e-06
        %v1097 = vadd.f32 %v1065, 1e-06
        %v1098 = vadd.f32 %v1066, 1e-06
        %v1099 = vadd.f32 %v1067, 1e-06
        %v1100 = vadd.f32 %v1068, 1e-06
        %v1101 = vadd.f32 %v1069, 1e-06
        %v1102 = vadd.f32 %v1070, 1e-06
        %v1103 = vadd.f32 %v1071, 1e-06
        %v1104 = vadd.f32 %v1072, 1e-06
        %v1105 = vadd.f32 %v1073, 1e-06
        %v1106 = vadd.f32 %v1074, 1e-06
        %v1107 = vadd.f32 %v1075, 1e-06
        %v1108 = vadd.f32 %v1076, 1e-06
        %v1109 = vadd.f32 %v1077, 1e-06
        %v1110 = vadd.f32 %v1078, 1e-06
        %v1111 = vadd.f32 %v1079, 1e-06
        %v1112 = vadd.f32 %v1080, 1e-06
        %v1113 = vrsqrt.pop %v1081
        %v1114 = vrsqrt.pop %v1082
        %v1115 = vrsqrt.pop %v1083
        %v1116 = vrsqrt.pop %v1084
        %v1117 = vrsqrt.pop %v1085
        %v1118 = vrsqrt.pop %v1086
        %v1119 = vrsqrt.pop %v1087
        %v1120 = vrsqrt.pop %v1088
        %v1121 = vrsqrt.pop %v1089
        %v1122 = vrsqrt.pop %v1090
        %v1123 = vrsqrt.pop %v1091
        %v1124 = vrsqrt.pop %v1092
        %v1125 = vrsqrt.pop %v1093
        %v1126 = vrsqrt.pop %v1094
        %v1127 = vrsqrt.pop %v1095
        %v1128 = vrsqrt.pop %v1096
        %v1129 = vrsqrt.pop %v1097
        %v1130 = vrsqrt.pop %v1098
        %v1131 = vrsqrt.pop %v1099
        %v1132 = vrsqrt.pop %v1100
        %v1133 = vrsqrt.pop %v1101
        %v1134 = vrsqrt.pop %v1102
        %v1135 = vrsqrt.pop %v1103
        %v1136 = vrsqrt.pop %v1104
        %v1137 = vrsqrt.pop %v1105
        %v1138 = vrsqrt.pop %v1106
        %v1139 = vrsqrt.pop %v1107
        %v1140 = vrsqrt.pop %v1108
        %v1141 = vrsqrt.pop %v1109
        %v1142 = vrsqrt.pop %v1110
        %v1143 = vrsqrt.pop %v1111
        %v1144 = vrsqrt.pop %v1112
        %v1145 = vld [vmem:[%s207] sm:$0xf]
        %v1146 = vld [vmem:[%s207 + $0x4] sm:$0xf]
        %v1147 = vld [vmem:[%s207 + $0x8] sm:$0xf]
        %v1148 = vld [vmem:[%s207 + $0xc] sm:$0xf]
        %v1149 = vld [vmem:[%s207 + $0x10] sm:$0xf]
        %v1150 = vld [vmem:[%s207 + $0x14] sm:$0xf]
        %v1151 = vld [vmem:[%s207 + $0x18] sm:$0xf]
        %v1152 = vld [vmem:[%s207 + $0x1c] sm:$0xf]
        %v1153 = vld [vmem:[%s207 + $0x20] sm:$0xf]
        %v1154 = vld [vmem:[%s207 + $0x24] sm:$0xf]
        %v1155 = vld [vmem:[%s207 + $0x28] sm:$0xf]
        %v1156 = vld [vmem:[%s207 + $0x2c] sm:$0xf]
        %v1157 = vld [vmem:[%s207 + $0x30] sm:$0xf]
        %v1158 = vld [vmem:[%s207 + $0x34] sm:$0xf]
        %v1159 = vld [vmem:[%s207 + $0x38] sm:$0xf]
        %v1160 = vld [vmem:[%s207 + $0x3c] sm:$0xf]
        %v1161 = vld [vmem:[%s207 + $0x40] sm:$0xf]
        %v1162 = vld [vmem:[%s207 + $0x44] sm:$0xf]
        %v1163 = vld [vmem:[%s207 + $0x48] sm:$0xf]
        %v1164 = vld [vmem:[%s207 + $0x4c] sm:$0xf]
        %v1165 = vld [vmem:[%s207 + $0x50] sm:$0xf]
        %v1166 = vld [vmem:[%s207 + $0x54] sm:$0xf]
        %v1167 = vld [vmem:[%s207 + $0x58] sm:$0xf]
        %v1168 = vld [vmem:[%s207 + $0x5c] sm:$0xf]
        %v1169 = vld [vmem:[%s207 + $0x60] sm:$0xf]
        %v1170 = vld [vmem:[%s207 + $0x64] sm:$0xf]
        %v1171 = vld [vmem:[%s207 + $0x68] sm:$0xf]
        %v1172 = vld [vmem:[%s207 + $0x6c] sm:$0xf]
        %v1173 = vld [vmem:[%s207 + $0x70] sm:$0xf]
        %v1174 = vld [vmem:[%s207 + $0x74] sm:$0xf]
        %v1175 = vld [vmem:[%s207 + $0x78] sm:$0xf]
        %v1176 = vld [vmem:[%s207 + $0x7c] sm:$0xf]
        %v1177 = vmul.f32 %v1113, %v1145
        %v1178 = vmul.f32 %v1114, %v1146
        %v1179 = vmul.f32 %v1115, %v1147
        %v1180 = vmul.f32 %v1116, %v1148
        %v1181 = vmul.f32 %v1117, %v1149
        %v1182 = vmul.f32 %v1118, %v1150
        %v1183 = vmul.f32 %v1119, %v1151
        %v1184 = vmul.f32 %v1120, %v1152
        %v1185 = vmul.f32 %v1121, %v1153
        %v1186 = vmul.f32 %v1122, %v1154
        %v1187 = vmul.f32 %v1123, %v1155
        %v1188 = vmul.f32 %v1124, %v1156
        %v1189 = vmul.f32 %v1125, %v1157
        %v1190 = vmul.f32 %v1126, %v1158
        %v1191 = vmul.f32 %v1127, %v1159
        %v1192 = vmul.f32 %v1128, %v1160
        %v1193 = vmul.f32 %v1129, %v1161
        %v1194 = vmul.f32 %v1130, %v1162
        %v1195 = vmul.f32 %v1131, %v1163
        %v1196 = vmul.f32 %v1132, %v1164
        %v1197 = vmul.f32 %v1133, %v1165
        %v1198 = vmul.f32 %v1134, %v1166
        %v1199 = vmul.f32 %v1135, %v1167
        %v1200 = vmul.f32 %v1136, %v1168
        %v1201 = vmul.f32 %v1137, %v1169
        %v1202 = vmul.f32 %v1138, %v1170
        %v1203 = vmul.f32 %v1139, %v1171
        %v1204 = vmul.f32 %v1140, %v1172
        %v1205 = vmul.f32 %v1141, %v1173
        %v1206 = vmul.f32 %v1142, %v1174
        %v1207 = vmul.f32 %v1143, %v1175
        %v1208 = vmul.f32 %v1144, %v1176
        %v1209 = vld [vmem:[%s213] sm:$0xf]
        %v1210 = vld [vmem:[%s213 + $0x4] sm:$0xf]
        %v1211 = vld [vmem:[%s213 + $0x8] sm:$0xf]
        %v1212 = vld [vmem:[%s213 + $0xc] sm:$0xf]
        %v1213 = vld [vmem:[%s213 + $0x10] sm:$0xf]
        %v1214 = vld [vmem:[%s213 + $0x14] sm:$0xf]
        %v1215 = vld [vmem:[%s213 + $0x18] sm:$0xf]
        %v1216 = vld [vmem:[%s213 + $0x1c] sm:$0xf]
        %v1217 = vld [vmem:[%s213 + $0x20] sm:$0xf]
        %v1218 = vld [vmem:[%s213 + $0x24] sm:$0xf]
        %v1219 = vld [vmem:[%s213 + $0x28] sm:$0xf]
        %v1220 = vld [vmem:[%s213 + $0x2c] sm:$0xf]
        %v1221 = vld [vmem:[%s213 + $0x30] sm:$0xf]
        %v1222 = vld [vmem:[%s213 + $0x34] sm:$0xf]
        %v1223 = vld [vmem:[%s213 + $0x38] sm:$0xf]
        %v1224 = vld [vmem:[%s213 + $0x3c] sm:$0xf]
        %v1225 = vld [vmem:[%s213 + $0x40] sm:$0xf]
        %v1226 = vld [vmem:[%s213 + $0x44] sm:$0xf]
        %v1227 = vld [vmem:[%s213 + $0x48] sm:$0xf]
        %v1228 = vld [vmem:[%s213 + $0x4c] sm:$0xf]
        %v1229 = vld [vmem:[%s213 + $0x50] sm:$0xf]
        %v1230 = vld [vmem:[%s213 + $0x54] sm:$0xf]
        %v1231 = vld [vmem:[%s213 + $0x58] sm:$0xf]
        %v1232 = vld [vmem:[%s213 + $0x5c] sm:$0xf]
        %v1233 = vld [vmem:[%s213 + $0x60] sm:$0xf]
        %v1234 = vld [vmem:[%s213 + $0x64] sm:$0xf]
        %v1235 = vld [vmem:[%s213 + $0x68] sm:$0xf]
        %v1236 = vld [vmem:[%s213 + $0x6c] sm:$0xf]
        %v1237 = vld [vmem:[%s213 + $0x70] sm:$0xf]
        %v1238 = vld [vmem:[%s213 + $0x74] sm:$0xf]
        %v1239 = vld [vmem:[%s213 + $0x78] sm:$0xf]
        %v1240 = vld [vmem:[%s213 + $0x7c] sm:$0xf]
        %v1241 = vmul.f32 %v921, %v1177
        %v1242 = vmul.f32 %v922, %v1178
        %v1243 = vmul.f32 %v923, %v1179
        %v1244 = vmul.f32 %v924, %v1180
        %v1245 = vmul.f32 %v925, %v1181
        %v1246 = vmul.f32 %v926, %v1182
        %v1247 = vmul.f32 %v927, %v1183
        %v1248 = vmul.f32 %v928, %v1184
        %v1249 = vmul.f32 %v929, %v1185
        %v1250 = vmul.f32 %v930, %v1186
        %v1251 = vmul.f32 %v931, %v1187
        %v1252 = vmul.f32 %v932, %v1188
        %v1253 = vmul.f32 %v933, %v1189
        %v1254 = vmul.f32 %v934, %v1190
        %v1255 = vmul.f32 %v935, %v1191
        %v1256 = vmul.f32 %v936, %v1192
        %v1257 = vmul.f32 %v937, %v1193
        %v1258 = vmul.f32 %v938, %v1194
        %v1259 = vmul.f32 %v939, %v1195
        %v1260 = vmul.f32 %v940, %v1196
        %v1261 = vmul.f32 %v941, %v1197
        %v1262 = vmul.f32 %v942, %v1198
        %v1263 = vmul.f32 %v943, %v1199
        %v1264 = vmul.f32 %v944, %v1200
        %v1265 = vmul.f32 %v945, %v1201
        %v1266 = vmul.f32 %v946, %v1202
        %v1267 = vmul.f32 %v947, %v1203
        %v1268 = vmul.f32 %v948, %v1204
        %v1269 = vmul.f32 %v949, %v1205
        %v1270 = vmul.f32 %v950, %v1206
        %v1271 = vmul.f32 %v951, %v1207
        %v1272 = vmul.f32 %v952, %v1208
        %v1273 = vsub.f32 %v1209, %v1241
        %v1274 = vsub.f32 %v1210, %v1242
        %v1275 = vsub.f32 %v1211, %v1243
        %v1276 = vsub.f32 %v1212, %v1244
        %v1277 = vsub.f32 %v1213, %v1245
        %v1278 = vsub.f32 %v1214, %v1246
        %v1279 = vsub.f32 %v1215, %v1247
        %v1280 = vsub.f32 %v1216, %v1248
        %v1281 = vsub.f32 %v1217, %v1249
        %v1282 = vsub.f32 %v1218, %v1250
        %v1283 = vsub.f32 %v1219, %v1251
        %v1284 = vsub.f32 %v1220, %v1252
        %v1285 = vsub.f32 %v1221, %v1253
        %v1286 = vsub.f32 %v1222, %v1254
        %v1287 = vsub.f32 %v1223, %v1255
        %v1288 = vsub.f32 %v1224, %v1256
        %v1289 = vsub.f32 %v1225, %v1257
        %v1290 = vsub.f32 %v1226, %v1258
        %v1291 = vsub.f32 %v1227, %v1259
        %v1292 = vsub.f32 %v1228, %v1260
        %v1293 = vsub.f32 %v1229, %v1261
        %v1294 = vsub.f32 %v1230, %v1262
        %v1295 = vsub.f32 %v1231, %v1263
        %v1296 = vsub.f32 %v1232, %v1264
        %v1297 = vsub.f32 %v1233, %v1265
        %v1298 = vsub.f32 %v1234, %v1266
        %v1299 = vsub.f32 %v1235, %v1267
        %v1300 = vsub.f32 %v1236, %v1268
        %v1301 = vsub.f32 %v1237, %v1269
        %v1302 = vsub.f32 %v1238, %v1270
        %v1303 = vsub.f32 %v1239, %v1271
        %v1304 = vsub.f32 %v1240, %v1272
        %1306 = vset.pattern.permute.xlu0 0
        %1307 = vperm.xlu0 %1306, %v1177
        %v1308 = vpop.permute.xlu0 %1307
        %1311 = vset.pattern.permute.xlu0 0
        %1312 = vperm.xlu0 %1311, %v1178
        %v1313 = vpop.permute.xlu0 %1312
        %1316 = vset.pattern.permute.xlu0 0
        %1317 = vperm.xlu0 %1316, %v1179
        %v1318 = vpop.permute.xlu0 %1317
        %1321 = vset.pattern.permute.xlu0 0
        %1322 = vperm.xlu0 %1321, %v1180
        %v1323 = vpop.permute.xlu0 %1322
        %1326 = vset.pattern.permute.xlu0 0
        %1327 = vperm.xlu0 %1326, %v1181
        %v1328 = vpop.permute.xlu0 %1327
        %1331 = vset.pattern.permute.xlu0 0
        %1332 = vperm.xlu0 %1331, %v1182
        %v1333 = vpop.permute.xlu0 %1332
        %1336 = vset.pattern.permute.xlu0 0
        %1337 = vperm.xlu0 %1336, %v1183
        %v1338 = vpop.permute.xlu0 %1337
        %1341 = vset.pattern.permute.xlu0 0
        %1342 = vperm.xlu0 %1341, %v1184
        %v1343 = vpop.permute.xlu0 %1342
        %1346 = vset.pattern.permute.xlu0 0
        %1347 = vperm.xlu0 %1346, %v1185
        %v1348 = vpop.permute.xlu0 %1347
        %1351 = vset.pattern.permute.xlu0 0
        %1352 = vperm.xlu0 %1351, %v1186
        %v1353 = vpop.permute.xlu0 %1352
        %1356 = vset.pattern.permute.xlu0 0
        %1357 = vperm.xlu0 %1356, %v1187
        %v1358 = vpop.permute.xlu0 %1357
        %1361 = vset.pattern.permute.xlu0 0
        %1362 = vperm.xlu0 %1361, %v1188
        %v1363 = vpop.permute.xlu0 %1362
        %1366 = vset.pattern.permute.xlu0 0
        %1367 = vperm.xlu0 %1366, %v1189
        %v1368 = vpop.permute.xlu0 %1367
        %1371 = vset.pattern.permute.xlu0 0
        %1372 = vperm.xlu0 %1371, %v1190
        %v1373 = vpop.permute.xlu0 %1372
        %1376 = vset.pattern.permute.xlu0 0
        %1377 = vperm.xlu0 %1376, %v1191
        %v1378 = vpop.permute.xlu0 %1377
        %1381 = vset.pattern.permute.xlu0 0
        %1382 = vperm.xlu0 %1381, %v1192
        %v1383 = vpop.permute.xlu0 %1382
        %1386 = vset.pattern.permute.xlu0 0
        %1387 = vperm.xlu0 %1386, %v1193
        %v1388 = vpop.permute.xlu0 %1387
        %1391 = vset.pattern.permute.xlu0 0
        %1392 = vperm.xlu0 %1391, %v1194
        %v1393 = vpop.permute.xlu0 %1392
        %1396 = vset.pattern.permute.xlu0 0
        %1397 = vperm.xlu0 %1396, %v1195
        %v1398 = vpop.permute.xlu0 %1397
        %1401 = vset.pattern.permute.xlu0 0
        %1402 = vperm.xlu0 %1401, %v1196
        %v1403 = vpop.permute.xlu0 %1402
        %1406 = vset.pattern.permute.xlu0 0
        %1407 = vperm.xlu0 %1406, %v1197
        %v1408 = vpop.permute.xlu0 %1407
        %1411 = vset.pattern.permute.xlu0 0
        %1412 = vperm.xlu0 %1411, %v1198
        %v1413 = vpop.permute.xlu0 %1412
        %1416 = vset.pattern.permute.xlu0 0
        %1417 = vperm.xlu0 %1416, %v1199
        %v1418 = vpop.permute.xlu0 %1417
        %1421 = vset.pattern.permute.xlu0 0
        %1422 = vperm.xlu0 %1421, %v1200
        %v1423 = vpop.permute.xlu0 %1422
        %1426 = vset.pattern.permute.xlu0 0
        %1427 = vperm.xlu0 %1426, %v1201
        %v1428 = vpop.permute.xlu0 %1427
        %1431 = vset.pattern.permute.xlu0 0
        %1432 = vperm.xlu0 %1431, %v1202
        %v1433 = vpop.permute.xlu0 %1432
        %1436 = vset.pattern.permute.xlu0 0
        %1437 = vperm.xlu0 %1436, %v1203
        %v1438 = vpop.permute.xlu0 %1437
        %1441 = vset.pattern.permute.xlu0 0
        %1442 = vperm.xlu0 %1441, %v1204
        %v1443 = vpop.permute.xlu0 %1442
        %1446 = vset.pattern.permute.xlu0 0
        %1447 = vperm.xlu0 %1446, %v1205
        %v1448 = vpop.permute.xlu0 %1447
        %1451 = vset.pattern.permute.xlu0 0
        %1452 = vperm.xlu0 %1451, %v1206
        %v1453 = vpop.permute.xlu0 %1452
        %1456 = vset.pattern.permute.xlu0 0
        %1457 = vperm.xlu0 %1456, %v1207
        %v1458 = vpop.permute.xlu0 %1457
        %1461 = vset.pattern.permute.xlu0 0
        %1462 = vperm.xlu0 %1461, %v1208
        %v1463 = vpop.permute.xlu0 %1462
        %v1465 = vmul.f32 %v216, %v1308
        %v1466 = vmul.f32 %v217, %v1313
        %v1467 = vmul.f32 %v218, %v1318
        %v1468 = vmul.f32 %v219, %v1323
        %v1469 = vmul.f32 %v220, %v1328
        %v1470 = vmul.f32 %v221, %v1333
        %v1471 = vmul.f32 %v222, %v1338
        %v1472 = vmul.f32 %v223, %v1343
        %v1473 = vmul.f32 %v224, %v1348
        %v1474 = vmul.f32 %v225, %v1353
        %v1475 = vmul.f32 %v226, %v1358
        %v1476 = vmul.f32 %v227, %v1363
        %v1477 = vmul.f32 %v228, %v1368
        %v1478 = vmul.f32 %v229, %v1373
        %v1479 = vmul.f32 %v230, %v1378
        %v1480 = vmul.f32 %v231, %v1383
        %v1481 = vmul.f32 %v232, %v1388
        %v1482 = vmul.f32 %v233, %v1393
        %v1483 = vmul.f32 %v234, %v1398
        %v1484 = vmul.f32 %v235, %v1403
        %v1485 = vmul.f32 %v236, %v1408
        %v1486 = vmul.f32 %v237, %v1413
        %v1487 = vmul.f32 %v238, %v1418
        %v1488 = vmul.f32 %v239, %v1423
        %v1489 = vmul.f32 %v240, %v1428
        %v1490 = vmul.f32 %v241, %v1433
        %v1491 = vmul.f32 %v242, %v1438
        %v1492 = vmul.f32 %v243, %v1443
        %v1493 = vmul.f32 %v244, %v1448
        %v1494 = vmul.f32 %v245, %v1453
        %v1495 = vmul.f32 %v246, %v1458
        %v1496 = vmul.f32 %v247, %v1463
        %1498 = vset.pattern.permute.xlu0 0
        %1499 = vperm.xlu0 %1498, %v1273
        %v1500 = vpop.permute.xlu0 %1499
        %1503 = vset.pattern.permute.xlu0 0
        %1504 = vperm.xlu0 %1503, %v1274
        %v1505 = vpop.permute.xlu0 %1504
        %1508 = vset.pattern.permute.xlu0 0
        %1509 = vperm.xlu0 %1508, %v1275
        %v1510 = vpop.permute.xlu0 %1509
        %1513 = vset.pattern.permute.xlu0 0
        %1514 = vperm.xlu0 %1513, %v1276
        %v1515 = vpop.permute.xlu0 %1514
        %1518 = vset.pattern.permute.xlu0 0
        %1519 = vperm.xlu0 %1518, %v1277
        %v1520 = vpop.permute.xlu0 %1519
        %1523 = vset.pattern.permute.xlu0 0
        %1524 = vperm.xlu0 %1523, %v1278
        %v1525 = vpop.permute.xlu0 %1524
        %1528 = vset.pattern.permute.xlu0 0
        %1529 = vperm.xlu0 %1528, %v1279
        %v1530 = vpop.permute.xlu0 %1529
        %1533 = vset.pattern.permute.xlu0 0
        %1534 = vperm.xlu0 %1533, %v1280
        %v1535 = vpop.permute.xlu0 %1534
        %1538 = vset.pattern.permute.xlu0 0
        %1539 = vperm.xlu0 %1538, %v1281
        %v1540 = vpop.permute.xlu0 %1539
        %1543 = vset.pattern.permute.xlu0 0
        %1544 = vperm.xlu0 %1543, %v1282
        %v1545 = vpop.permute.xlu0 %1544
        %1548 = vset.pattern.permute.xlu0 0
        %1549 = vperm.xlu0 %1548, %v1283
        %v1550 = vpop.permute.xlu0 %1549
        %1553 = vset.pattern.permute.xlu0 0
        %1554 = vperm.xlu0 %1553, %v1284
        %v1555 = vpop.permute.xlu0 %1554
        %1558 = vset.pattern.permute.xlu0 0
        %1559 = vperm.xlu0 %1558, %v1285
        %v1560 = vpop.permute.xlu0 %1559
        %1563 = vset.pattern.permute.xlu0 0
        %1564 = vperm.xlu0 %1563, %v1286
        %v1565 = vpop.permute.xlu0 %1564
        %1568 = vset.pattern.permute.xlu0 0
        %1569 = vperm.xlu0 %1568, %v1287
        %v1570 = vpop.permute.xlu0 %1569
        %1573 = vset.pattern.permute.xlu0 0
        %1574 = vperm.xlu0 %1573, %v1288
        %v1575 = vpop.permute.xlu0 %1574
        %1578 = vset.pattern.permute.xlu0 0
        %1579 = vperm.xlu0 %1578, %v1289
        %v1580 = vpop.permute.xlu0 %1579
        %1583 = vset.pattern.permute.xlu0 0
        %1584 = vperm.xlu0 %1583, %v1290
        %v1585 = vpop.permute.xlu0 %1584
        %1588 = vset.pattern.permute.xlu0 0
        %1589 = vperm.xlu0 %1588, %v1291
        %v1590 = vpop.permute.xlu0 %1589
        %1593 = vset.pattern.permute.xlu0 0
        %1594 = vperm.xlu0 %1593, %v1292
        %v1595 = vpop.permute.xlu0 %1594
        %1598 = vset.pattern.permute.xlu0 0
        %1599 = vperm.xlu0 %1598, %v1293
        %v1600 = vpop.permute.xlu0 %1599
        %1603 = vset.pattern.permute.xlu0 0
        %1604 = vperm.xlu0 %1603, %v1294
        %v1605 = vpop.permute.xlu0 %1604
        %1608 = vset.pattern.permute.xlu0 0
        %1609 = vperm.xlu0 %1608, %v1295
        %v1610 = vpop.permute.xlu0 %1609
        %1613 = vset.pattern.permute.xlu0 0
        %1614 = vperm.xlu0 %1613, %v1296
        %v1615 = vpop.permute.xlu0 %1614
        %1618 = vset.pattern.permute.xlu0 0
        %1619 = vperm.xlu0 %1618, %v1297
        %v1620 = vpop.permute.xlu0 %1619
        %1623 = vset.pattern.permute.xlu0 0
        %1624 = vperm.xlu0 %1623, %v1298
        %v1625 = vpop.permute.xlu0 %1624
        %1628 = vset.pattern.permute.xlu0 0
        %1629 = vperm.xlu0 %1628, %v1299
        %v1630 = vpop.permute.xlu0 %1629
        %1633 = vset.pattern.permute.xlu0 0
        %1634 = vperm.xlu0 %1633, %v1300
        %v1635 = vpop.permute.xlu0 %1634
        %1638 = vset.pattern.permute.xlu0 0
        %1639 = vperm.xlu0 %1638, %v1301
        %v1640 = vpop.permute.xlu0 %1639
        %1643 = vset.pattern.permute.xlu0 0
        %1644 = vperm.xlu0 %1643, %v1302
        %v1645 = vpop.permute.xlu0 %1644
        %1648 = vset.pattern.permute.xlu0 0
        %1649 = vperm.xlu0 %1648, %v1303
        %v1650 = vpop.permute.xlu0 %1649
        %1653 = vset.pattern.permute.xlu0 0
        %1654 = vperm.xlu0 %1653, %v1304
        %v1655 = vpop.permute.xlu0 %1654
        %v1657 = vadd.f32 %v1465, %v1500
        %v1658 = vadd.f32 %v1466, %v1505
        %v1659 = vadd.f32 %v1467, %v1510
        %v1660 = vadd.f32 %v1468, %v1515
        %v1661 = vadd.f32 %v1469, %v1520
        %v1662 = vadd.f32 %v1470, %v1525
        %v1663 = vadd.f32 %v1471, %v1530
        %v1664 = vadd.f32 %v1472, %v1535
        %v1665 = vadd.f32 %v1473, %v1540
        %v1666 = vadd.f32 %v1474, %v1545
        %v1667 = vadd.f32 %v1475, %v1550
        %v1668 = vadd.f32 %v1476, %v1555
        %v1669 = vadd.f32 %v1477, %v1560
        %v1670 = vadd.f32 %v1478, %v1565
        %v1671 = vadd.f32 %v1479, %v1570
        %v1672 = vadd.f32 %v1480, %v1575
        %v1673 = vadd.f32 %v1481, %v1580
        %v1674 = vadd.f32 %v1482, %v1585
        %v1675 = vadd.f32 %v1483, %v1590
        %v1676 = vadd.f32 %v1484, %v1595
        %v1677 = vadd.f32 %v1485, %v1600
        %v1678 = vadd.f32 %v1486, %v1605
        %v1679 = vadd.f32 %v1487, %v1610
        %v1680 = vadd.f32 %v1488, %v1615
        %v1681 = vadd.f32 %v1489, %v1620
        %v1682 = vadd.f32 %v1490, %v1625
        %v1683 = vadd.f32 %v1491, %v1630
        %v1684 = vadd.f32 %v1492, %v1635
        %v1685 = vadd.f32 %v1493, %v1640
        %v1686 = vadd.f32 %v1494, %v1645
        %v1687 = vadd.f32 %v1495, %v1650
        %v1688 = vadd.f32 %v1496, %v1655
        %1689 = vst [vmem:[%s196] sm:$0xf] %v1657
        %1690 = vst [vmem:[%s196 + $0x4] sm:$0xf] %v1658
        %1691 = vst [vmem:[%s196 + $0x8] sm:$0xf] %v1659
        %1692 = vst [vmem:[%s196 + $0xc] sm:$0xf] %v1660
        %1693 = vst [vmem:[%s196 + $0x10] sm:$0xf] %v1661
        %1694 = vst [vmem:[%s196 + $0x14] sm:$0xf] %v1662
        %1695 = vst [vmem:[%s196 + $0x18] sm:$0xf] %v1663
        %1696 = vst [vmem:[%s196 + $0x1c] sm:$0xf] %v1664
        %1697 = vst [vmem:[%s196 + $0x20] sm:$0xf] %v1665
        %1698 = vst [vmem:[%s196 + $0x24] sm:$0xf] %v1666
        %1699 = vst [vmem:[%s196 + $0x28] sm:$0xf] %v1667
        %1700 = vst [vmem:[%s196 + $0x2c] sm:$0xf] %v1668
        %1701 = vst [vmem:[%s196 + $0x30] sm:$0xf] %v1669
        %1702 = vst [vmem:[%s196 + $0x34] sm:$0xf] %v1670
        %1703 = vst [vmem:[%s196 + $0x38] sm:$0xf] %v1671
        %1704 = vst [vmem:[%s196 + $0x3c] sm:$0xf] %v1672
        %1705 = vst [vmem:[%s196 + $0x40] sm:$0xf] %v1673
        %1706 = vst [vmem:[%s196 + $0x44] sm:$0xf] %v1674
        %1707 = vst [vmem:[%s196 + $0x48] sm:$0xf] %v1675
        %1708 = vst [vmem:[%s196 + $0x4c] sm:$0xf] %v1676
        %1709 = vst [vmem:[%s196 + $0x50] sm:$0xf] %v1677
        %1710 = vst [vmem:[%s196 + $0x54] sm:$0xf] %v1678
        %1711 = vst [vmem:[%s196 + $0x58] sm:$0xf] %v1679
        %1712 = vst [vmem:[%s196 + $0x5c] sm:$0xf] %v1680
        %1713 = vst [vmem:[%s196 + $0x60] sm:$0xf] %v1681
        %1714 = vst [vmem:[%s196 + $0x64] sm:$0xf] %v1682
        %1715 = vst [vmem:[%s196 + $0x68] sm:$0xf] %v1683
        %1716 = vst [vmem:[%s196 + $0x6c] sm:$0xf] %v1684
        %1717 = vst [vmem:[%s196 + $0x70] sm:$0xf] %v1685
        %1718 = vst [vmem:[%s196 + $0x74] sm:$0xf] %v1686
        %1719 = vst [vmem:[%s196 + $0x78] sm:$0xf] %v1687
        %1720 = vst [vmem:[%s196 + $0x7c] sm:$0xf] %v1688
        %s1721 = sand.u32 %s103, 1
        %s1722 = scalar_lea.sflag [#allocation3], %s1721
        %s1723 = sand.u32 %s103, 1
        %s1724 = smul.addr %s1723, 128
        %s1725 = scalar_lea.vmem [#allocation2], %s1724
        // Predicated region
        $region33: #{tpu_custom_call.1} parent=31 // pred_check
          %p1726 = pneg %p113
        $region34: #{tpu_custom_call.1} parent=31 // pred_check_branch
          %1728 = sbr.rel (%p1726) target = $region36
        $region35: #{tpu_custom_call.1} parent=31 // pred_region
          %s1729 = smul.u32 32, %s17
          %s1731 = ssub.s32 2048, 2048
          %1732 = vsyncadd %s1722, %s1731
          %s1733 = smul.addr %s1729, 64
          %s1734 = scalar_lea.hbm %s3, %s1733
          %s1735 = sshll.u32 %s1725, 4
          %s1736 = int_to_ptr.vmem [resolvable:$true] %s1735
          %1741 = dma.vmem_to_hbm [thread:$0]  %s1736, 2048, %s1734, %s1722, 64, 64, 4
        $region36: #{tpu_custom_call.1} parent=31 // pred_fallthru
          _
      $region32: #{tpu_custom_call.1} parent=5 // pred_fallthru
        _
      %p1742 = scmp.le.s32.totalorder 2, %s12
      // Predicated region
      $region37: #{tpu_custom_call.1} parent=5 // pred_check
        %p1743 = pneg %p1742
      $region38: #{tpu_custom_call.1} parent=5 // pred_check_branch
        %1745 = sbr.rel (%p1743) target = $region40
      $region39: #{tpu_custom_call.1} parent=5 // pred_region
        %s1746 = ssub.s32 %s12, 2
        // Predicated region
        $region41: #{tpu_custom_call.1} parent=39 // pred_check
          %p1747 = pneg %p119
        $region42: #{tpu_custom_call.1} parent=39 // pred_check_branch
          %1749 = sbr.rel (%p1747) target = $region44
        $region43: #{tpu_custom_call.1} parent=39 // pred_region
          %s1750 = sand.u32 %s104, 1
          %s1751 = scalar_lea.sflag [#allocation3], %s1750
          %s1752 = sand.u32 %s104, 1
          %s1753 = smul.addr %s1752, 128
          %s1754 = scalar_lea.vmem [#allocation2], %s1753
          %1755 = dma.done %s1751, 2048
        $region44: #{tpu_custom_call.1} parent=39 // pred_fallthru
          _
      $region40: #{tpu_custom_call.1} parent=5 // pred_fallthru
        _
    $region6: #{tpu_custom_call.1} parent=1 // loop_footer
      %s16 = sadd.s32 1, %s12
    $region7: #{tpu_custom_call.1} parent=1 // loop_footer_branch
      %11 = sbr.rel target = $region3
    $region8: #{tpu_custom_call.1} parent=1 // loop_exit
      _
    %1756 = vsyncpa [#allocation3], 1
    %s1757 = scalar_lea.sflag [#allocation3], 1
    %1758 = vsyncpa %s1757, 1

</llo_original>
